<compile_context>
chip_gen: v6e
topology: v6e:2x2x1
jax: 0.10.0
libtpu: 0.0.40
codegen_flags: <defaults>
</compile_context>

<pallas_src>
import functools

import jax
import jax.numpy as jnp
from jax.experimental import pallas as pl
from jax.experimental.pallas import tpu as pltpu


# ------------------------------------------------------------------ kernels --

def _cheb_project(x, lt_ref, we_ref, bias, k):
    """Fused ChebConv: relu( sum_k kron(I_B, W_k) @ (T_k(L) x)  + bias ).

    x:      (B*Cin, V)            activations, batch-major rows, V on lanes
    lt_ref: (V, V)                L^T (rescaled Laplacian, pre-transposed)
    we_ref: (K, B*Cout, B*Cin)    expanded block-diagonal projection weights
    bias:   (B*Cout, 1)
    """
    y = jnp.dot(we_ref[0], x, preferred_element_type=jnp.float32)
    if k > 1:
        lt = lt_ref[...]
        x_prev = x
        x_curr = jnp.dot(x, lt, preferred_element_type=jnp.float32)      # T_1(L) x
        y = y + jnp.dot(we_ref[1], x_curr, preferred_element_type=jnp.float32)
        for i in range(2, k):
            x_next = (2.0 * jnp.dot(x_curr, lt, preferred_element_type=jnp.float32)
                      - x_prev)                                          # T_i(L) x
            y = y + jnp.dot(we_ref[i], x_next, preferred_element_type=jnp.float32)
            x_prev, x_curr = x_curr, x_next
    return jnp.maximum(y + bias, 0.0)


def _maxpool_lanes(y, sel_ref):
    """MaxPool1d(p, stride=p) over the lane (vertex) axis.

    sel_ref: (p, V, V//p) one-hot selectors; y @ sel[o] extracts lanes
    o, o+p, o+2p, ...  The pool is the elementwise max of the p selections.
    Selection matmuls are exact in f32 and need no reshapes / strided slices.
    """
    p = sel_ref.shape[0]
    out = jnp.dot(y, sel_ref[0], preferred_element_type=jnp.float32)
    for o in range(1, p):
        out = jnp.maximum(
            out, jnp.dot(y, sel_ref[o], preferred_element_type=jnp.float32))
    return out


def conv_stack_kernel(x_ref, l1t_ref, w1e_ref, b1e_ref, s1_ref,
                      l2t_ref, w2e_ref, b2e_ref, s2_ref, o_ref, *, k1, k2):
    """conv1 + ReLU + pool4 + conv2 + ReLU + pool4, fully fused in VMEM."""
    h = x_ref[...]                                               # (B*IN_C, V)
    h = _cheb_project(h, l1t_ref, w1e_ref, b1e_ref[...], k1)     # (B*CL1_F, V)
    h = _maxpool_lanes(h, s1_ref)                                # (B*CL1_F, V/4)
    h = _cheb_project(h, l2t_ref, w2e_ref, b2e_ref[...], k2)     # (B*CL2_F, V/4)
    h = _maxpool_lanes(h, s2_ref)                                # (B*CL2_F, V/16)
    o_ref[...] = h


def fc_stack_kernel(x_ref, w1_ref, b1_ref, w2_ref, b2_ref, o_ref):
    """fc1 + ReLU (+ dropout p=0) + fc2, fused."""
    h = jnp.dot(x_ref[...], w1_ref[...],
                preferred_element_type=jnp.float32) + b1_ref[...]
    h = jnp.maximum(h, 0.0)
    # TODO(synk): dropout with prob > 0 (training mode) not implemented; the
    # module's default prob=0 / eval behaviour is identity, which this matches.
    o_ref[...] = (jnp.dot(h, w2_ref[...], preferred_element_type=jnp.float32)
                  + b2_ref[...]).astype(o_ref.dtype)


# ----------------------------------------------------------------- wrappers --

def _vmem_spec():
    return pl.BlockSpec(memory_space=pltpu.MemorySpace.VMEM)


def net_forward(x, prep):
    """Net.forward (eval semantics).  x: (B, IN_C, IN_V) -> (B, FC2_F)."""
    B, C, V = x.shape
    x2d = x.reshape(B * C, V)                # free reshape; row index = b*C + c

    k1 = prep["W1e"].shape[0]
    k2 = prep["W2e"].shape[0]
    conv_rows = prep["W2e"].shape[1]         # B * CL2_F
    conv_lanes = prep["S2"].shape[2]         # IN_V // 16

    conv_out = pl.pallas_call(
        functools.partial(conv_stack_kernel, k1=k1, k2=k2),
        out_shape=jax.ShapeDtypeStruct((conv_rows, conv_lanes), jnp.float32),
        in_specs=[_vmem_spec() for _ in range(9)],
        out_specs=_vmem_spec(),
    )(x2d, prep["L1t"], prep["W1e"], prep["b1e"], prep["S1"],
      prep["L2t"], prep["W2e"], prep["b2e"], prep["S2"])

    # rows are batch-major (b*CL2_F + f), so torch's x.view(B, -1) is a plain
    # row-major reshape here (tiny, single XLA op on B*CL2_F*V/16 floats).
    flat = conv_out.reshape(B, -1)           # (B, CL2_F * IN_V // 16)

    out = pl.pallas_call(
        fc_stack_kernel,
        out_shape=jax.ShapeDtypeStruct((B, prep["Wfc2t"].shape[1]), jnp.float32),
        in_specs=[_vmem_spec() for _ in range(5)],
        out_specs=_vmem_spec(),
    )(flat, prep["Wfc1t"], prep["bfc1"], prep["Wfc2t"], prep["bfc2"])
    return out


# ------------------------------------------------------ one-time param prep --

def make_pool_selectors(V, p):
    """(p, V, V//p) one-hot matrices: sel[o, i, j] = 1  iff  i == p*j + o."""
    i = jnp.arange(V)[None, :, None]
    o = jnp.arange(p)[:, None, None]
    j = jnp.arange(V // p)[None, None, :]
    return (i == p * j + o).astype(jnp.float32)


def prepare_params(params, B, in_v, pool=4):
    """One-time re-layout of torch-style params into kernel-ready arrays."""
    k1, k2 = params["CL1_K"], params["CL2_K"]
    eye_b = jnp.eye(B, dtype=jnp.float32)

    def expand_conv_w(w, K):
        # torch Linear weight (Fout, Cin*K) with column index c*K + k  ->
        # (K, B*Fout, B*Cin) per-batch block-diagonal weights.
        fout, fin_k = w.shape
        cin = fin_k // K
        w_r = w.reshape(fout, cin, K)
        return jnp.stack([jnp.kron(eye_b, w_r[:, :, k]) for k in range(K)], axis=0)

    def expand_conv_b(b):
        return jnp.tile(b, B).reshape(B * b.shape[0], 1)   # index b*Fout + f

    return {
        "L1t": params["L0"].T,
        "W1e": expand_conv_w(params["conv1_w"], k1),
        "b1e": expand_conv_b(params["conv1_b"]),
        "S1": make_pool_selectors(in_v, pool),
        "L2t": params["L2"].T,
        "W2e": expand_conv_w(params["conv2_w"], k2),
        "b2e": expand_conv_b(params["conv2_b"]),
        "S2": make_pool_selectors(in_v // pool, pool),
        "Wfc1t": params["fc1_w"].T,
        "bfc1": params["fc1_b"].reshape(1, -1),
        "Wfc2t": params["fc2_w"].T,
        "bfc2": params["fc2_b"].reshape(1, -1),
    }


# ----------------------------------------------------------------- building --

def make_rescaled_laplacian(key, V):
    """Synthetic rescaled graph Laplacian: L_norm - I (assumes lmax ~= 2)."""
    a = jax.random.uniform(key, (V, V), dtype=jnp.float32)
    a = 0.5 * (a + a.T)
    d = jnp.maximum(jnp.sum(a, axis=1), 1e-6)     # guard against zero degree
    dinv = 1.0 / jnp.sqrt(d)
    l_norm = jnp.eye(V, dtype=jnp.float32) - dinv[:, None] * a * dinv[None, :]
    return l_norm - jnp.eye(V, dtype=jnp.float32)


def init_params(key, IN_C, IN_V, CL1_F, CL1_K, CL2_F, CL2_K, FC1_F, FC2_F):
    keys = jax.random.split(key, 6)
    FC1_IN = CL2_F * IN_V // 16

    def u(k, shape, fin, fout):
        scale = jnp.sqrt(2.0 / (fin + fout))
        return jax.random.uniform(k, shape, jnp.float32, -scale, scale)

    return {
        "CL1_K": CL1_K,
        "CL2_K": CL2_K,
        "L0": make_rescaled_laplacian(keys[0], IN_V),
        "L2": make_rescaled_laplacian(keys[1], IN_V // 4),
        "conv1_w": u(keys[2], (CL1_F, IN_C * CL1_K), IN_C * CL1_K, CL1_F),
        "conv1_b": jnp.zeros((CL1_F,), jnp.float32),
        "conv2_w": u(keys[3], (CL2_F, CL1_F * CL2_K), CL1_F * CL2_K, CL2_F),
        "conv2_b": jnp.zeros((CL2_F,), jnp.float32),
        "fc1_w": u(keys[4], (FC1_F, FC1_IN), FC1_IN, FC1_F),
        "fc1_b": jnp.zeros((FC1_F,), jnp.float32),
        "fc2_w": u(keys[5], (FC2_F, FC1_F), FC1_F, FC2_F),
        "fc2_b": jnp.zeros((FC2_F,), jnp.float32),
    }


# --------------------------------------------------------- pure-JAX reference --

def _ref_dot(a, b):
    return jnp.dot(a, b, precision=jax.lax.Precision.HIGHEST)


def reference_forward(x, params):
    """Direct transcription of the PyTorch Net.forward (eval, prob=0)."""
    def graph_conv(h, L, W, bias, K):
        B, C, V = h.shape
        x0 = jnp.transpose(h, (2, 1, 0)).reshape(V, C * B)
        xs = [x0]
        if K > 1:
            xs.append(_ref_dot(L, x0))
        for k in range(2, K):
            xs.append(2.0 * _ref_dot(L, xs[k - 1]) - xs[k - 2])
        xk = jnp.stack(xs, axis=0)                       # (K, V, C*B)
        xk = xk.reshape(K, V, C, B).transpose(3, 1, 2, 0).reshape(B * V, C * K)
        y = _ref_dot(xk, W.T) + bias
        return y.reshape(B, V, -1).transpose(0, 2, 1)

    def pool(h, p=4):
        B, C, V = h.shape
        return jnp.max(h.reshape(B, C, V // p, p), axis=-1)

    h = pool(jax.nn.relu(graph_conv(x, params["L0"], params["conv1_w"],
                                    params["conv1_b"], params["CL1_K"])))
    h = pool(jax.nn.relu(graph_conv(h, params["L2"], params["conv2_w"],
                                    params["conv2_b"], params["CL2_K"])))
    h = h.reshape(h.shape[0], -1)
    h = jax.nn.relu(_ref_dot(h, params["fc1_w"].T) + params["fc1_b"])
    return _ref_dot(h, params["fc2_w"].T) + params["fc2_b"]


# --------------------------------------------------------------------- main --

if __name__ == "__main__":
    # Small shapes consistent with the module (IN_V divisible by 16: two 4x pools).
    B, IN_C, IN_V = 2, 4, 64
    CL1_F, CL1_K = 8, 3
    CL2_F, CL2_K = 16, 3
    FC1_F, FC2_F = 32, 10

    key = jax.random.PRNGKey(0)
    k_param, k_x = jax.random.split(key)
    params = init_params(k_param, IN_C, IN_V, CL1_F, CL1_K, CL2_F, CL2_K,
                         FC1_F, FC2_F)
    prep = prepare_params(params, B=B, in_v=IN_V, pool=4)

    x = jax.random.normal(k_x, (B, IN_C, IN_V), dtype=jnp.float32)

    fwd = jax.jit(net_forward)
    out = fwd(x, prep)                        # (B, FC2_F)
    jax.block_until_ready(out)
    assert out.shape == (B, FC2_F), out.shape

    ref = reference_forward(x, params)
    assert bool(jnp.allclose(out, ref, rtol=1e-2, atol=1e-2)), (
        "max abs err = %g" % float(jnp.max(jnp.abs(out - ref))))

    print("KERNEL_OK")
</pallas_src>

<mosaic_0001>
module attributes {stable_mosaic.version = 11 : i64} {
  func.func @conv_stack_kernel(%arg0: memref<8x64xf32, #tpu.memory_space<vmem>>, %arg1: memref<64x64xf32, #tpu.memory_space<vmem>>, %arg2: memref<3x16x8xf32, #tpu.memory_space<vmem>>, %arg3: memref<16x1xf32, #tpu.memory_space<vmem>>, %arg4: memref<4x64x16xf32, #tpu.memory_space<vmem>>, %arg5: memref<16x16xf32, #tpu.memory_space<vmem>>, %arg6: memref<3x32x16xf32, #tpu.memory_space<vmem>>, %arg7: memref<32x1xf32, #tpu.memory_space<vmem>>, %arg8: memref<4x16x4xf32, #tpu.memory_space<vmem>>, %arg9: memref<32x4xf32, #tpu.memory_space<vmem>>) attributes {dimension_semantics = [], scalar_prefetch = 0 : i64, scratch_operands = 0 : i64, tpu.core_type = #tpu.core_type<tc>} {
    %c0 = arith.constant 0 : index
    %c0_0 = arith.constant 0 : index
    %0 = vector.load %arg0[%c0, %c0_0] : memref<8x64xf32, #tpu.memory_space<vmem>>, vector<8x64xf32>
    %c0_1 = arith.constant 0 : index
    %c0_2 = arith.constant 0 : index
    %1 = vector.load %arg3[%c0_1, %c0_2] : memref<16x1xf32, #tpu.memory_space<vmem>>, vector<16x1xf32>
    %c0_3 = arith.constant 0 : index
    %c0_4 = arith.constant 0 : index
    %c0_5 = arith.constant 0 : index
    %2 = vector.load %arg2[%c0_3, %c0_4, %c0_5] : memref<3x16x8xf32, #tpu.memory_space<vmem>>, vector<1x16x8xf32>
    %3 = vector.shape_cast %2 : vector<1x16x8xf32> to vector<16x8xf32>
    %cst = arith.constant dense<0.000000e+00> : vector<16x64xf32>
    %4 = tpu.matmul %3, %0, %cst {dimension_numbers = #tpu.dot_dimension_numbers<[1], [0], [0], [1], [0, 0, 1, 1], [], []>} : vector<16x8xf32>, vector<8x64xf32>, vector<16x64xf32> -> vector<16x64xf32>
    %c0_6 = arith.constant 0 : index
    %c0_7 = arith.constant 0 : index
    %5 = vector.load %arg1[%c0_6, %c0_7] : memref<64x64xf32, #tpu.memory_space<vmem>>, vector<64x64xf32>
    %cst_8 = arith.constant dense<0.000000e+00> : vector<8x64xf32>
    %6 = tpu.matmul %0, %5, %cst_8 {dimension_numbers = #tpu.dot_dimension_numbers<[1], [0], [0], [1], [0, 0, 1, 1], [], []>} : vector<8x64xf32>, vector<64x64xf32>, vector<8x64xf32> -> vector<8x64xf32>
    %c1 = arith.constant 1 : index
    %c0_9 = arith.constant 0 : index
    %c0_10 = arith.constant 0 : index
    %7 = vector.load %arg2[%c1, %c0_9, %c0_10] : memref<3x16x8xf32, #tpu.memory_space<vmem>>, vector<1x16x8xf32>
    %8 = vector.shape_cast %7 : vector<1x16x8xf32> to vector<16x8xf32>
    %cst_11 = arith.constant dense<0.000000e+00> : vector<16x64xf32>
    %9 = tpu.matmul %8, %6, %cst_11 {dimension_numbers = #tpu.dot_dimension_numbers<[1], [0], [0], [1], [0, 0, 1, 1], [], []>} : vector<16x8xf32>, vector<8x64xf32>, vector<16x64xf32> -> vector<16x64xf32>
    %10 = arith.addf %4, %9 : vector<16x64xf32>
    %cst_12 = arith.constant dense<0.000000e+00> : vector<8x64xf32>
    %11 = tpu.matmul %6, %5, %cst_12 {dimension_numbers = #tpu.dot_dimension_numbers<[1], [0], [0], [1], [0, 0, 1, 1], [], []>} : vector<8x64xf32>, vector<64x64xf32>, vector<8x64xf32> -> vector<8x64xf32>
    %cst_13 = arith.constant 2.000000e+00 : f32
    %12 = vector.broadcast %cst_13 : f32 to vector<8x64xf32>
    %13 = arith.mulf %12, %11 : vector<8x64xf32>
    %14 = arith.subf %13, %0 : vector<8x64xf32>
    %c2 = arith.constant 2 : index
    %c0_14 = arith.constant 0 : index
    %c0_15 = arith.constant 0 : index
    %15 = vector.load %arg2[%c2, %c0_14, %c0_15] : memref<3x16x8xf32, #tpu.memory_space<vmem>>, vector<1x16x8xf32>
    %16 = vector.shape_cast %15 : vector<1x16x8xf32> to vector<16x8xf32>
    %cst_16 = arith.constant dense<0.000000e+00> : vector<16x64xf32>
    %17 = tpu.matmul %16, %14, %cst_16 {dimension_numbers = #tpu.dot_dimension_numbers<[1], [0], [0], [1], [0, 0, 1, 1], [], []>} : vector<16x8xf32>, vector<8x64xf32>, vector<16x64xf32> -> vector<16x64xf32>
    %18 = arith.addf %10, %17 : vector<16x64xf32>
    %19 = vector.broadcast %1 : vector<16x1xf32> to vector<16x64xf32>
    %20 = arith.addf %18, %19 : vector<16x64xf32>
    %cst_17 = arith.constant 0.000000e+00 : f32
    %21 = vector.broadcast %cst_17 : f32 to vector<16x64xf32>
    %22 = arith.maximumf %20, %21 : vector<16x64xf32>
    %c0_18 = arith.constant 0 : index
    %c0_19 = arith.constant 0 : index
    %c0_20 = arith.constant 0 : index
    %23 = vector.load %arg4[%c0_18, %c0_19, %c0_20] : memref<4x64x16xf32, #tpu.memory_space<vmem>>, vector<1x64x16xf32>
    %24 = vector.shape_cast %23 : vector<1x64x16xf32> to vector<64x16xf32>
    %cst_21 = arith.constant dense<0.000000e+00> : vector<16x16xf32>
    %25 = tpu.matmul %22, %24, %cst_21 {dimension_numbers = #tpu.dot_dimension_numbers<[1], [0], [0], [1], [0, 0, 1, 1], [], []>} : vector<16x64xf32>, vector<64x16xf32>, vector<16x16xf32> -> vector<16x16xf32>
    %c1_22 = arith.constant 1 : index
    %c0_23 = arith.constant 0 : index
    %c0_24 = arith.constant 0 : index
    %26 = vector.load %arg4[%c1_22, %c0_23, %c0_24] : memref<4x64x16xf32, #tpu.memory_space<vmem>>, vector<1x64x16xf32>
    %27 = vector.shape_cast %26 : vector<1x64x16xf32> to vector<64x16xf32>
    %cst_25 = arith.constant dense<0.000000e+00> : vector<16x16xf32>
    %28 = tpu.matmul %22, %27, %cst_25 {dimension_numbers = #tpu.dot_dimension_numbers<[1], [0], [0], [1], [0, 0, 1, 1], [], []>} : vector<16x64xf32>, vector<64x16xf32>, vector<16x16xf32> -> vector<16x16xf32>
    %29 = arith.maximumf %25, %28 : vector<16x16xf32>
    %c2_26 = arith.constant 2 : index
    %c0_27 = arith.constant 0 : index
    %c0_28 = arith.constant 0 : index
    %30 = vector.load %arg4[%c2_26, %c0_27, %c0_28] : memref<4x64x16xf32, #tpu.memory_space<vmem>>, vector<1x64x16xf32>
    %31 = vector.shape_cast %30 : vector<1x64x16xf32> to vector<64x16xf32>
    %cst_29 = arith.constant dense<0.000000e+00> : vector<16x16xf32>
    %32 = tpu.matmul %22, %31, %cst_29 {dimension_numbers = #tpu.dot_dimension_numbers<[1], [0], [0], [1], [0, 0, 1, 1], [], []>} : vector<16x64xf32>, vector<64x16xf32>, vector<16x16xf32> -> vector<16x16xf32>
    %33 = arith.maximumf %29, %32 : vector<16x16xf32>
    %c3 = arith.constant 3 : index
    %c0_30 = arith.constant 0 : index
    %c0_31 = arith.constant 0 : index
    %34 = vector.load %arg4[%c3, %c0_30, %c0_31] : memref<4x64x16xf32, #tpu.memory_space<vmem>>, vector<1x64x16xf32>
    %35 = vector.shape_cast %34 : vector<1x64x16xf32> to vector<64x16xf32>
    %cst_32 = arith.constant dense<0.000000e+00> : vector<16x16xf32>
    %36 = tpu.matmul %22, %35, %cst_32 {dimension_numbers = #tpu.dot_dimension_numbers<[1], [0], [0], [1], [0, 0, 1, 1], [], []>} : vector<16x64xf32>, vector<64x16xf32>, vector<16x16xf32> -> vector<16x16xf32>
    %37 = arith.maximumf %33, %36 : vector<16x16xf32>
    %c0_33 = arith.constant 0 : index
    %c0_34 = arith.constant 0 : index
    %38 = vector.load %arg7[%c0_33, %c0_34] : memref<32x1xf32, #tpu.memory_space<vmem>>, vector<32x1xf32>
    %c0_35 = arith.constant 0 : index
    %c0_36 = arith.constant 0 : index
    %c0_37 = arith.constant 0 : index
    %39 = vector.load %arg6[%c0_35, %c0_36, %c0_37] : memref<3x32x16xf32, #tpu.memory_space<vmem>>, vector<1x32x16xf32>
    %40 = vector.shape_cast %39 : vector<1x32x16xf32> to vector<32x16xf32>
    %cst_38 = arith.constant dense<0.000000e+00> : vector<32x16xf32>
    %41 = tpu.matmul %40, %37, %cst_38 {dimension_numbers = #tpu.dot_dimension_numbers<[1], [0], [0], [1], [0, 0, 1, 1], [], []>} : vector<32x16xf32>, vector<16x16xf32>, vector<32x16xf32> -> vector<32x16xf32>
    %c0_39 = arith.constant 0 : index
    %c0_40 = arith.constant 0 : index
    %42 = vector.load %arg5[%c0_39, %c0_40] : memref<16x16xf32, #tpu.memory_space<vmem>>, vector<16x16xf32>
    %cst_41 = arith.constant dense<0.000000e+00> : vector<16x16xf32>
    %43 = tpu.matmul %37, %42, %cst_41 {dimension_numbers = #tpu.dot_dimension_numbers<[1], [0], [0], [1], [0, 0, 1, 1], [], []>} : vector<16x16xf32>, vector<16x16xf32>, vector<16x16xf32> -> vector<16x16xf32>
    %c1_42 = arith.constant 1 : index
    %c0_43 = arith.constant 0 : index
    %c0_44 = arith.constant 0 : index
    %44 = vector.load %arg6[%c1_42, %c0_43, %c0_44] : memref<3x32x16xf32, #tpu.memory_space<vmem>>, vector<1x32x16xf32>
    %45 = vector.shape_cast %44 : vector<1x32x16xf32> to vector<32x16xf32>
    %cst_45 = arith.constant dense<0.000000e+00> : vector<32x16xf32>
    %46 = tpu.matmul %45, %43, %cst_45 {dimension_numbers = #tpu.dot_dimension_numbers<[1], [0], [0], [1], [0, 0, 1, 1], [], []>} : vector<32x16xf32>, vector<16x16xf32>, vector<32x16xf32> -> vector<32x16xf32>
    %47 = arith.addf %41, %46 : vector<32x16xf32>
    %cst_46 = arith.constant dense<0.000000e+00> : vector<16x16xf32>
    %48 = tpu.matmul %43, %42, %cst_46 {dimension_numbers = #tpu.dot_dimension_numbers<[1], [0], [0], [1], [0, 0, 1, 1], [], []>} : vector<16x16xf32>, vector<16x16xf32>, vector<16x16xf32> -> vector<16x16xf32>
    %cst_47 = arith.constant 2.000000e+00 : f32
    %49 = vector.broadcast %cst_47 : f32 to vector<16x16xf32>
    %50 = arith.mulf %49, %48 : vector<16x16xf32>
    %51 = arith.subf %50, %37 : vector<16x16xf32>
    %c2_48 = arith.constant 2 : index
    %c0_49 = arith.constant 0 : index
    %c0_50 = arith.constant 0 : index
    %52 = vector.load %arg6[%c2_48, %c0_49, %c0_50] : memref<3x32x16xf32, #tpu.memory_space<vmem>>, vector<1x32x16xf32>
    %53 = vector.shape_cast %52 : vector<1x32x16xf32> to vector<32x16xf32>
    %cst_51 = arith.constant dense<0.000000e+00> : vector<32x16xf32>
    %54 = tpu.matmul %53, %51, %cst_51 {dimension_numbers = #tpu.dot_dimension_numbers<[1], [0], [0], [1], [0, 0, 1, 1], [], []>} : vector<32x16xf32>, vector<16x16xf32>, vector<32x16xf32> -> vector<32x16xf32>
    %55 = arith.addf %47, %54 : vector<32x16xf32>
    %56 = vector.broadcast %38 : vector<32x1xf32> to vector<32x16xf32>
    %57 = arith.addf %55, %56 : vector<32x16xf32>
    %cst_52 = arith.constant 0.000000e+00 : f32
    %58 = vector.broadcast %cst_52 : f32 to vector<32x16xf32>
    %59 = arith.maximumf %57, %58 : vector<32x16xf32>
    %c0_53 = arith.constant 0 : index
    %c0_54 = arith.constant 0 : index
    %c0_55 = arith.constant 0 : index
    %60 = vector.load %arg8[%c0_53, %c0_54, %c0_55] : memref<4x16x4xf32, #tpu.memory_space<vmem>>, vector<1x16x4xf32>
    %61 = vector.shape_cast %60 : vector<1x16x4xf32> to vector<16x4xf32>
    %cst_56 = arith.constant dense<0.000000e+00> : vector<32x4xf32>
    %62 = tpu.matmul %59, %61, %cst_56 {dimension_numbers = #tpu.dot_dimension_numbers<[1], [0], [0], [1], [0, 0, 1, 1], [], []>} : vector<32x16xf32>, vector<16x4xf32>, vector<32x4xf32> -> vector<32x4xf32>
    %c1_57 = arith.constant 1 : index
    %c0_58 = arith.constant 0 : index
    %c0_59 = arith.constant 0 : index
    %63 = vector.load %arg8[%c1_57, %c0_58, %c0_59] : memref<4x16x4xf32, #tpu.memory_space<vmem>>, vector<1x16x4xf32>
    %64 = vector.shape_cast %63 : vector<1x16x4xf32> to vector<16x4xf32>
    %cst_60 = arith.constant dense<0.000000e+00> : vector<32x4xf32>
    %65 = tpu.matmul %59, %64, %cst_60 {dimension_numbers = #tpu.dot_dimension_numbers<[1], [0], [0], [1], [0, 0, 1, 1], [], []>} : vector<32x16xf32>, vector<16x4xf32>, vector<32x4xf32> -> vector<32x4xf32>
    %66 = arith.maximumf %62, %65 : vector<32x4xf32>
    %c2_61 = arith.constant 2 : index
    %c0_62 = arith.constant 0 : index
    %c0_63 = arith.constant 0 : index
    %67 = vector.load %arg8[%c2_61, %c0_62, %c0_63] : memref<4x16x4xf32, #tpu.memory_space<vmem>>, vector<1x16x4xf32>
    %68 = vector.shape_cast %67 : vector<1x16x4xf32> to vector<16x4xf32>
    %cst_64 = arith.constant dense<0.000000e+00> : vector<32x4xf32>
    %69 = tpu.matmul %59, %68, %cst_64 {dimension_numbers = #tpu.dot_dimension_numbers<[1], [0], [0], [1], [0, 0, 1, 1], [], []>} : vector<32x16xf32>, vector<16x4xf32>, vector<32x4xf32> -> vector<32x4xf32>
    %70 = arith.maximumf %66, %69 : vector<32x4xf32>
    %c3_65 = arith.constant 3 : index
    %c0_66 = arith.constant 0 : index
    %c0_67 = arith.constant 0 : index
    %71 = vector.load %arg8[%c3_65, %c0_66, %c0_67] : memref<4x16x4xf32, #tpu.memory_space<vmem>>, vector<1x16x4xf32>
    %72 = vector.shape_cast %71 : vector<1x16x4xf32> to vector<16x4xf32>
    %cst_68 = arith.constant dense<0.000000e+00> : vector<32x4xf32>
    %73 = tpu.matmul %59, %72, %cst_68 {dimension_numbers = #tpu.dot_dimension_numbers<[1], [0], [0], [1], [0, 0, 1, 1], [], []>} : vector<32x16xf32>, vector<16x4xf32>, vector<32x4xf32> -> vector<32x4xf32>
    %74 = arith.maximumf %70, %73 : vector<32x4xf32>
    %c0_69 = arith.constant 0 : index
    %c0_70 = arith.constant 0 : index
    %75 = vector.load %arg9[%c0_69, %c0_70] : memref<32x4xf32, #tpu.memory_space<vmem>>, vector<32x4xf32>
    tpu.vector_store %arg9[%c0_69, %c0_70], %74 {strides = array<i32>} : memref<32x4xf32, #tpu.memory_space<vmem>>, vector<32x4xf32>,
    return
  }
}

module attributes {stable_mosaic.version = 11 : i64} {
  func.func @fc_stack_kernel(%arg0: memref<2x64xf32, #tpu.memory_space<vmem>>, %arg1: memref<64x32xf32, #tpu.memory_space<vmem>>, %arg2: memref<1x32xf32, #tpu.memory_space<vmem>>, %arg3: memref<32x10xf32, #tpu.memory_space<vmem>>, %arg4: memref<1x10xf32, #tpu.memory_space<vmem>>, %arg5: memref<2x10xf32, #tpu.memory_space<vmem>>) attributes {dimension_semantics = [], scalar_prefetch = 0 : i64, scratch_operands = 0 : i64, tpu.core_type = #tpu.core_type<tc>} {
    %c0 = arith.constant 0 : index
    %c0_0 = arith.constant 0 : index
    %0 = vector.load %arg0[%c0, %c0_0] : memref<2x64xf32, #tpu.memory_space<vmem>>, vector<2x64xf32>
    %c0_1 = arith.constant 0 : index
    %c0_2 = arith.constant 0 : index
    %1 = vector.load %arg1[%c0_1, %c0_2] : memref<64x32xf32, #tpu.memory_space<vmem>>, vector<64x32xf32>
    %cst = arith.constant dense<0.000000e+00> : vector<2x32xf32>
    %2 = tpu.matmul %0, %1, %cst {dimension_numbers = #tpu.dot_dimension_numbers<[1], [0], [0], [1], [0, 0, 1, 1], [], []>} : vector<2x64xf32>, vector<64x32xf32>, vector<2x32xf32> -> vector<2x32xf32>
    %c0_3 = arith.constant 0 : index
    %c0_4 = arith.constant 0 : index
    %3 = vector.load %arg2[%c0_3, %c0_4] : memref<1x32xf32, #tpu.memory_space<vmem>>, vector<1x32xf32>
    %4 = vector.broadcast %3 : vector<1x32xf32> to vector<2x32xf32>
    %5 = arith.addf %2, %4 : vector<2x32xf32>
    %cst_5 = arith.constant 0.000000e+00 : f32
    %6 = vector.broadcast %cst_5 : f32 to vector<2x32xf32>
    %7 = arith.maximumf %5, %6 : vector<2x32xf32>
    %c0_6 = arith.constant 0 : index
    %c0_7 = arith.constant 0 : index
    %8 = vector.load %arg3[%c0_6, %c0_7] : memref<32x10xf32, #tpu.memory_space<vmem>>, vector<32x10xf32>
    %cst_8 = arith.constant dense<0.000000e+00> : vector<2x10xf32>
    %9 = tpu.matmul %7, %8, %cst_8 {dimension_numbers = #tpu.dot_dimension_numbers<[1], [0], [0], [1], [0, 0, 1, 1], [], []>} : vector<2x32xf32>, vector<32x10xf32>, vector<2x10xf32> -> vector<2x10xf32>
    %c0_9 = arith.constant 0 : index
    %c0_10 = arith.constant 0 : index
    %10 = vector.load %arg4[%c0_9, %c0_10] : memref<1x10xf32, #tpu.memory_space<vmem>>, vector<1x10xf32>
    %11 = vector.broadcast %10 : vector<1x10xf32> to vector<2x10xf32>
    %12 = arith.addf %9, %11 : vector<2x10xf32>
    %c0_11 = arith.constant 0 : index
    %c0_12 = arith.constant 0 : index
    %13 = vector.load %arg5[%c0_11, %c0_12] : memref<2x10xf32, #tpu.memory_space<vmem>>, vector<2x10xf32>
    tpu.vector_store %arg5[%c0_11, %c0_12], %12 {strides = array<i32>} : memref<2x10xf32, #tpu.memory_space<vmem>>, vector<2x10xf32>,
    return
  }
}

</mosaic_0001>

<llo_original>
// kernel: net_forward.3
$region0: #{net_forward.3}
  #allocation0 [shape = 'u32[]', space=smem, size = 0x4, offset = 0x4, fixed_abs, tag = 'smem constant byte address 0x4 - core index']
  #allocation1 [shape = 'u32[144,128]{1,0:T(1,128)}', space=vmem, size = 0x12000, scoped, tag = 'internal scratch']
  %s0 = inlined_call_operand.vmem [shape: f32[2,64], index: 0, kind: input, shape index: {}]
  %s1 = inlined_call_operand.vmem [shape: f32[64,32], index: 1, kind: input, shape index: {}]
  %s2 = inlined_call_operand.vmem [shape: f32[1,32], index: 2, kind: input, shape index: {}]
  %s3 = inlined_call_operand.vmem [shape: f32[32,10], index: 3, kind: input, shape index: {}]
  %s4 = inlined_call_operand.vmem [shape: f32[1,10], index: 4, kind: input, shape index: {}]
  %s5 = inlined_call_operand.hbm [shape: f32[2,10], index: 5, kind: output, shape index: {}]
  %s6 = sld [smem:[#allocation0]]
  $region30: #{net_forward.3} parent=0
    _
  %s8 = ssub.s32 1, %s6
  %s9 = scalar_select 0, %s8, %s6
  $region1: #{net_forward.3} parent=0
    #allocation2 [shape = 'u8[1024]{0}', space=vmem, size = 0x400, scoped, tag = 'output window, operand 0, single buffered']
    #allocation3 [shape = 's32[1]{0}', space=sflag, size = 0x4, scoped, tag = 'scoped memory for net_forward.3']
    %10 = vsyncpa [#allocation3], 0
    // Predicated region
    $region2: #{net_forward.3} parent=1 // pred_check
      _
    $region3: #{net_forward.3} parent=1 // pred_check_branch
      %12 = sbr.rel (0) target = $region5
    $region4: #{net_forward.3} parent=1 // pred_region
      _
    $region5: #{net_forward.3} parent=1 // pred_fallthru
      _
    // Predicated region
    $region6: #{net_forward.3} parent=1 // pred_check
      _
    $region7: #{net_forward.3} parent=1 // pred_check_branch
      %14 = sbr.rel (0) target = $region9
    $region8: #{net_forward.3} parent=1 // pred_region
      _
    $region9: #{net_forward.3} parent=1 // pred_fallthru
      _
    // Predicated region
    $region10: #{net_forward.3} parent=1 // pred_check
      _
    $region11: #{net_forward.3} parent=1 // pred_check_branch
      %16 = sbr.rel (0) target = $region13
    $region12: #{net_forward.3} parent=1 // pred_region
      _
    $region13: #{net_forward.3} parent=1 // pred_fallthru
      _
    // Predicated region
    $region14: #{net_forward.3} parent=1 // pred_check
      _
    $region15: #{net_forward.3} parent=1 // pred_check_branch
      %18 = sbr.rel (0) target = $region17
    $region16: #{net_forward.3} parent=1 // pred_region
      _
    $region17: #{net_forward.3} parent=1 // pred_fallthru
      _
    // Predicated region
    $region18: #{net_forward.3} parent=1 // pred_check
      _
    $region19: #{net_forward.3} parent=1 // pred_check_branch
      %20 = sbr.rel (0) target = $region21
    $region20: #{net_forward.3} parent=1 // pred_region
      _
    $region21: #{net_forward.3} parent=1 // pred_fallthru
      _
    %v21 = vld [vmem:[%s0] sm:$0x3]
    %v22 = vld [vmem:[%s1] sm:$0xff]
    %v23 = vld [vmem:[%s1 + $0x8] sm:$0xff]
    %v24 = vld [vmem:[%s1 + $0x10] sm:$0xff]
    %v25 = vld [vmem:[%s1 + $0x18] sm:$0xff]
    %v26 = vld [vmem:[%s1 + $0x20] sm:$0xff]
    %v27 = vld [vmem:[%s1 + $0x28] sm:$0xff]
    %v28 = vld [vmem:[%s1 + $0x30] sm:$0xff]
    %v29 = vld [vmem:[%s1 + $0x38] sm:$0xff]
    %v30 = vld [vmem:[%s2] sm:$0x1]
    %v32 = vlaneseq
    %v33 = vshrl.u32 %v32, 7
    %v34 = vsub.s32 0, %v33
    %v35 = vrot.slane %v30, %v34
    %vm37 = vcmask 523264
    %v39 = vsel %vm37, %v21, 0
    %41 = vmatprep.subr.mxu0 0.0
    %42 = vmatpush1.msra.mxu0 0.0
    %43 = vmatprep.subr.mxu0 0.0
    %44 = vmatpush1.msra.mxu0 0.0
    %45 = vmatprep.subr.mxu0 0.0
    %46 = vmatpush1.msra.mxu0 0.0
    %47 = vmatprep.subr.mxu0 0.0
    %48 = vmatpush1.msra.mxu0 0.0
    %49 = vmatprep.subr.mxu0 0.0
    %50 = vmatpush1.msra.mxu0 0.0
    %51 = vmatprep.subr.mxu0 0.0
    %52 = vmatpush1.msra.mxu0 0.0
    %53 = vmatprep.subr.mxu0 0.0
    %54 = vmatpush1.msra.mxu0 0.0
    %55 = vmatprep.subr.mxu0 0.0
    %56 = vmatpush1.msra.mxu0 0.0
    %57 = vmatprep.subr.mxu0 0.0
    %58 = vmatpush1.msra.mxu0 %v29
    %59 = vmatprep.subr.mxu0 0.0
    %60 = vmatpush1.msra.mxu0 %v28
    %61 = vmatprep.subr.mxu0 0.0
    %62 = vmatpush1.msra.mxu0 %v27
    %63 = vmatprep.subr.mxu0 0.0
    %64 = vmatpush1.msra.mxu0 %v26
    %65 = vmatprep.subr.mxu0 0.0
    %66 = vmatpush1.msra.mxu0 %v25
    %67 = vmatprep.subr.mxu0 0.0
    %68 = vmatpush1.msra.mxu0 %v24
    %69 = vmatprep.subr.mxu0 0.0
    %70 = vmatpush1.msra.mxu0 %v23
    %71 = vmatprep.subr.mxu0 0.0
    %72 = vmatpush1.msra.mxu0 %v22
    %73 = vmatprep.subr.mxu0 0.0
    %74 = vmatpush2.msra.mxu0 0.0
    %75 = vmatprep.subr.mxu0 0.0
    %76 = vmatpush2.msra.mxu0 0.0
    %77 = vmatprep.subr.mxu0 0.0
    %78 = vmatpush2.msra.mxu0 0.0
    %79 = vmatprep.subr.mxu0 0.0
    %80 = vmatpush2.msra.mxu0 0.0
    %81 = vmatprep.subr.mxu0 0.0
    %82 = vmatpush2.msra.mxu0 0.0
    %83 = vmatprep.subr.mxu0 0.0
    %84 = vmatpush2.msra.mxu0 0.0
    %85 = vmatprep.subr.mxu0 0.0
    %86 = vmatpush2.msra.mxu0 0.0
    %87 = vmatprep.subr.mxu0 0.0
    %88 = vmatpush2.msra.mxu0 0.0
    %89 = vmatprep.subr.mxu0 0.0
    %90 = vmatpush2.msra.mxu0 0.0
    %91 = vmatprep.subr.mxu0 0.0
    %92 = vmatpush2.msra.mxu0 0.0
    %93 = vmatprep.subr.mxu0 0.0
    %94 = vmatpush2.msra.mxu0 0.0
    %95 = vmatprep.subr.mxu0 0.0
    %96 = vmatpush2.msra.mxu0 0.0
    %97 = vmatprep.subr.mxu0 0.0
    %98 = vmatpush2.msra.mxu0 0.0
    %99 = vmatprep.subr.mxu0 0.0
    %100 = vmatpush2.msra.mxu0 0.0
    %101 = vmatprep.subr.mxu0 0.0
    %102 = vmatpush2.msra.mxu0 0.0
    %103 = vmatprep.subr.mxu0 0.0
    %104 = vmatpush2.msra.mxu0 0.0
    %105 = vmatprep.mubr.f32.mxu0 0.0
    %106 = vmatmul.mubr.f32.gmra.mxu0 %v39
    %v107 = vpop.f32.mrf.mxu0
    %v108 = vadd.f32 %v35, %v107
    %v109 = vpop.f32.mrf.mxu0
    %110 = vdwg.mxu0
    %v111 = vmax.f32 %v108, 0.0
    %v112 = vld [vmem:[%s3] sm:$0xff]
    %v113 = vld [vmem:[%s3 + $0x8] sm:$0xff]
    %v114 = vld [vmem:[%s3 + $0x10] sm:$0xff]
    %v115 = vld [vmem:[%s3 + $0x18] sm:$0xff]
    %v116 = vld [vmem:[%s4] sm:$0x1]
    %v118 = vlaneseq
    %v119 = vshrl.u32 %v118, 7
    %v120 = vsub.s32 0, %v119
    %v121 = vrot.slane %v116, %v120
    %vm123 = vcmask 261120
    %v125 = vsel %vm123, %v111, 0
    %127 = vmatprep.subr.mxu0 0.0
    %128 = vmatpush1.msra.mxu0 0.0
    %129 = vmatprep.subr.mxu0 0.0
    %130 = vmatpush1.msra.mxu0 0.0
    %131 = vmatprep.subr.mxu0 0.0
    %132 = vmatpush1.msra.mxu0 0.0
    %133 = vmatprep.subr.mxu0 0.0
    %134 = vmatpush1.msra.mxu0 0.0
    %135 = vmatprep.subr.mxu0 0.0
    %136 = vmatpush1.msra.mxu0 0.0
    %137 = vmatprep.subr.mxu0 0.0
    %138 = vmatpush1.msra.mxu0 0.0
    %139 = vmatprep.subr.mxu0 0.0
    %140 = vmatpush1.msra.mxu0 0.0
    %141 = vmatprep.subr.mxu0 0.0
    %142 = vmatpush1.msra.mxu0 0.0
    %143 = vmatprep.subr.mxu0 0.0
    %144 = vmatpush1.msra.mxu0 0.0
    %145 = vmatprep.subr.mxu0 0.0
    %146 = vmatpush1.msra.mxu0 0.0
    %147 = vmatprep.subr.mxu0 0.0
    %148 = vmatpush1.msra.mxu0 0.0
    %149 = vmatprep.subr.mxu0 0.0
    %150 = vmatpush1.msra.mxu0 0.0
    %151 = vmatprep.subr.mxu0 0.0
    %152 = vmatpush1.msra.mxu0 %v115
    %153 = vmatprep.subr.mxu0 0.0
    %154 = vmatpush1.msra.mxu0 %v114
    %155 = vmatprep.subr.mxu0 0.0
    %156 = vmatpush1.msra.mxu0 %v113
    %157 = vmatprep.subr.mxu0 0.0
    %158 = vmatpush1.msra.mxu0 %v112
    %159 = vmatprep.subr.mxu0 0.0
    %160 = vmatpush2.msra.mxu0 0.0
    %161 = vmatprep.subr.mxu0 0.0
    %162 = vmatpush2.msra.mxu0 0.0
    %163 = vmatprep.subr.mxu0 0.0
    %164 = vmatpush2.msra.mxu0 0.0
    %165 = vmatprep.subr.mxu0 0.0
    %166 = vmatpush2.msra.mxu0 0.0
    %167 = vmatprep.subr.mxu0 0.0
    %168 = vmatpush2.msra.mxu0 0.0
    %169 = vmatprep.subr.mxu0 0.0
    %170 = vmatpush2.msra.mxu0 0.0
    %171 = vmatprep.subr.mxu0 0.0
    %172 = vmatpush2.msra.mxu0 0.0
    %173 = vmatprep.subr.mxu0 0.0
    %174 = vmatpush2.msra.mxu0 0.0
    %175 = vmatprep.subr.mxu0 0.0
    %176 = vmatpush2.msra.mxu0 0.0
    %177 = vmatprep.subr.mxu0 0.0
    %178 = vmatpush2.msra.mxu0 0.0
    %179 = vmatprep.subr.mxu0 0.0
    %180 = vmatpush2.msra.mxu0 0.0
    %181 = vmatprep.subr.mxu0 0.0
    %182 = vmatpush2.msra.mxu0 0.0
    %183 = vmatprep.subr.mxu0 0.0
    %184 = vmatpush2.msra.mxu0 0.0
    %185 = vmatprep.subr.mxu0 0.0
    %186 = vmatpush2.msra.mxu0 0.0
    %187 = vmatprep.subr.mxu0 0.0
    %188 = vmatpush2.msra.mxu0 0.0
    %189 = vmatprep.subr.mxu0 0.0
    %190 = vmatpush2.msra.mxu0 0.0
    %191 = vmatprep.mubr.f32.mxu0 0.0
    %192 = vmatmul.mubr.f32.gmra.mxu0 %v125
    %v193 = vpop.f32.mrf.mxu0
    %v194 = vadd.f32 %v121, %v193
    %v195 = vpop.f32.mrf.mxu0
    %196 = vdwg.mxu0
    %vm197 = vcmask 74752
    %198 = vst.msk [vmem:[#allocation2] sm:$0x3] %vm197, %v194
    // Predicated region
    $region22: #{net_forward.3} parent=1 // pred_check
      _
    $region23: #{net_forward.3} parent=1 // pred_check_branch
      %200 = sbr.rel (0) target = $region25
    $region24: #{net_forward.3} parent=1 // pred_region
      %s202 = ssub.s32 32, 32
      %203 = vsyncadd [#allocation3], %s202
      %s205 = sshll.u32 [#allocation2], 4
      %s206 = int_to_ptr.vmem [resolvable:$true] %s205
      %208 = dma.vmem_to_hbm [thread:$0]  %s206, 32, %s5, [#allocation3]
    $region25: #{net_forward.3} parent=1 // pred_fallthru
      _
    // Predicated region
    $region26: #{net_forward.3} parent=1 // pred_check
      _
    $region27: #{net_forward.3} parent=1 // pred_check_branch
      %210 = sbr.rel (0) target = $region29
    $region28: #{net_forward.3} parent=1 // pred_region
      %211 = dma.done [#allocation3], 32
    $region29: #{net_forward.3} parent=1 // pred_fallthru
      _
    %212 = vsyncpa [#allocation3], 1

// kernel: net_forward.2
$region0: #{net_forward.2}
  #allocation0 [shape = 'u32[]', space=smem, size = 0x4, offset = 0x4, fixed_abs, tag = 'smem constant byte address 0x4 - core index']
  #allocation1 [shape = 'u32[144,128]{1,0:T(1,128)}', space=vmem, size = 0x12000, scoped, tag = 'internal scratch']
  %s0 = inlined_call_operand.vmem [shape: f32[8,64], index: 0, kind: input, shape index: {}]
  %s1 = inlined_call_operand.vmem [shape: f32[64,64], index: 1, kind: input, shape index: {}]
  %s2 = inlined_call_operand.vmem [shape: f32[3,16,8], index: 2, kind: input, shape index: {}]
  %s3 = inlined_call_operand.vmem [shape: f32[16,1], index: 3, kind: input, shape index: {}]
  %s4 = inlined_call_operand.vmem [shape: f32[4,64,16], index: 4, kind: input, shape index: {}]
  %s5 = inlined_call_operand.vmem [shape: f32[16,16], index: 5, kind: input, shape index: {}]
  %s6 = inlined_call_operand.vmem [shape: f32[3,32,16], index: 6, kind: input, shape index: {}]
  %s7 = inlined_call_operand.vmem [shape: f32[32,1], index: 7, kind: input, shape index: {}]
  %s8 = inlined_call_operand.vmem [shape: f32[4,16,4], index: 8, kind: input, shape index: {}]
  %s9 = inlined_call_operand.vmem [shape: f32[32,4], index: 9, kind: output, shape index: {}]
  %s10 = sld [smem:[#allocation0]]
  $region46: #{net_forward.2} parent=0
    _
  %s12 = ssub.s32 1, %s10
  %s13 = scalar_select 0, %s12, %s10
  // Predicated region
  $region2: #{net_forward.2} parent=0 // pred_check
    _
  $region3: #{net_forward.2} parent=0 // pred_check_branch
    %15 = sbr.rel (0) target = $region5
  $region4: #{net_forward.2} parent=0 // pred_region
    _
  $region5: #{net_forward.2} parent=0 // pred_fallthru
    _
  // Predicated region
  $region6: #{net_forward.2} parent=0 // pred_check
    _
  $region7: #{net_forward.2} parent=0 // pred_check_branch
    %17 = sbr.rel (0) target = $region9
  $region8: #{net_forward.2} parent=0 // pred_region
    _
  $region9: #{net_forward.2} parent=0 // pred_fallthru
    _
  // Predicated region
  $region10: #{net_forward.2} parent=0 // pred_check
    _
  $region11: #{net_forward.2} parent=0 // pred_check_branch
    %19 = sbr.rel (0) target = $region13
  $region12: #{net_forward.2} parent=0 // pred_region
    _
  $region13: #{net_forward.2} parent=0 // pred_fallthru
    _
  // Predicated region
  $region14: #{net_forward.2} parent=0 // pred_check
    _
  $region15: #{net_forward.2} parent=0 // pred_check_branch
    %21 = sbr.rel (0) target = $region17
  $region16: #{net_forward.2} parent=0 // pred_region
    _
  $region17: #{net_forward.2} parent=0 // pred_fallthru
    _
  // Predicated region
  $region18: #{net_forward.2} parent=0 // pred_check
    _
  $region19: #{net_forward.2} parent=0 // pred_check_branch
    %23 = sbr.rel (0) target = $region21
  $region20: #{net_forward.2} parent=0 // pred_region
    _
  $region21: #{net_forward.2} parent=0 // pred_fallthru
    _
  // Predicated region
  $region22: #{net_forward.2} parent=0 // pred_check
    _
  $region23: #{net_forward.2} parent=0 // pred_check_branch
    %25 = sbr.rel (0) target = $region25
  $region24: #{net_forward.2} parent=0 // pred_region
    _
  $region25: #{net_forward.2} parent=0 // pred_fallthru
    _
  // Predicated region
  $region26: #{net_forward.2} parent=0 // pred_check
    _
  $region27: #{net_forward.2} parent=0 // pred_check_branch
    %27 = sbr.rel (0) target = $region29
  $region28: #{net_forward.2} parent=0 // pred_region
    _
  $region29: #{net_forward.2} parent=0 // pred_fallthru
    _
  // Predicated region
  $region30: #{net_forward.2} parent=0 // pred_check
    _
  $region31: #{net_forward.2} parent=0 // pred_check_branch
    %29 = sbr.rel (0) target = $region33
  $region32: #{net_forward.2} parent=0 // pred_region
    _
  $region33: #{net_forward.2} parent=0 // pred_fallthru
    _
  // Predicated region
  $region34: #{net_forward.2} parent=0 // pred_check
    _
  $region35: #{net_forward.2} parent=0 // pred_check_branch
    %31 = sbr.rel (0) target = $region37
  $region36: #{net_forward.2} parent=0 // pred_region
    _
  $region37: #{net_forward.2} parent=0 // pred_fallthru
    _
  %v32 = vld [vmem:[%s0] sm:$0xff]
  %v33 = vld [vmem:[%s3] sm:$0xff]
  %v34 = vld [vmem:[%s3 + $0x8] sm:$0xff]
  %v35 = vld [vmem:[%s2] sm:$0xff]
  %v36 = vld [vmem:[%s2 + $0x8] sm:$0xff]
  %v37 = vld [vmem:[%s1] sm:$0xff]
  %v38 = vld [vmem:[%s1 + $0x8] sm:$0xff]
  %v39 = vld [vmem:[%s1 + $0x10] sm:$0xff]
  %v40 = vld [vmem:[%s1 + $0x18] sm:$0xff]
  %v41 = vld [vmem:[%s1 + $0x20] sm:$0xff]
  %v42 = vld [vmem:[%s1 + $0x28] sm:$0xff]
  %v43 = vld [vmem:[%s1 + $0x30] sm:$0xff]
  %v44 = vld [vmem:[%s1 + $0x38] sm:$0xff]
  %vm45 = vcmask 523264
  %v47 = vsel %vm45, %v32, 0
  %49 = vmatprep.subr.mxu0 0.0
  %50 = vmatpush1.msra.mxu0 0.0
  %51 = vmatprep.subr.mxu0 0.0
  %52 = vmatpush1.msra.mxu0 0.0
  %53 = vmatprep.subr.mxu0 0.0
  %54 = vmatpush1.msra.mxu0 0.0
  %55 = vmatprep.subr.mxu0 0.0
  %56 = vmatpush1.msra.mxu0 0.0
  %57 = vmatprep.subr.mxu0 0.0
  %58 = vmatpush1.msra.mxu0 0.0
  %59 = vmatprep.subr.mxu0 0.0
  %60 = vmatpush1.msra.mxu0 0.0
  %61 = vmatprep.subr.mxu0 0.0
  %62 = vmatpush1.msra.mxu0 0.0
  %63 = vmatprep.subr.mxu0 0.0
  %64 = vmatpush1.msra.mxu0 0.0
  %65 = vmatprep.subr.mxu0 0.0
  %66 = vmatpush1.msra.mxu0 %v44
  %67 = vmatprep.subr.mxu0 0.0
  %68 = vmatpush1.msra.mxu0 %v43
  %69 = vmatprep.subr.mxu0 0.0
  %70 = vmatpush1.msra.mxu0 %v42
  %71 = vmatprep.subr.mxu0 0.0
  %72 = vmatpush1.msra.mxu0 %v41
  %73 = vmatprep.subr.mxu0 0.0
  %74 = vmatpush1.msra.mxu0 %v40
  %75 = vmatprep.subr.mxu0 0.0
  %76 = vmatpush1.msra.mxu0 %v39
  %77 = vmatprep.subr.mxu0 0.0
  %78 = vmatpush1.msra.mxu0 %v38
  %79 = vmatprep.subr.mxu0 0.0
  %80 = vmatpush1.msra.mxu0 %v37
  %81 = vmatprep.subr.mxu0 0.0
  %82 = vmatpush2.msra.mxu0 0.0
  %83 = vmatprep.subr.mxu0 0.0
  %84 = vmatpush2.msra.mxu0 0.0
  %85 = vmatprep.subr.mxu0 0.0
  %86 = vmatpush2.msra.mxu0 0.0
  %87 = vmatprep.subr.mxu0 0.0
  %88 = vmatpush2.msra.mxu0 0.0
  %89 = vmatprep.subr.mxu0 0.0
  %90 = vmatpush2.msra.mxu0 0.0
  %91 = vmatprep.subr.mxu0 0.0
  %92 = vmatpush2.msra.mxu0 0.0
  %93 = vmatprep.subr.mxu0 0.0
  %94 = vmatpush2.msra.mxu0 0.0
  %95 = vmatprep.subr.mxu0 0.0
  %96 = vmatpush2.msra.mxu0 0.0
  %97 = vmatprep.subr.mxu0 0.0
  %98 = vmatpush2.msra.mxu0 0.0
  %99 = vmatprep.subr.mxu0 0.0
  %100 = vmatpush2.msra.mxu0 0.0
  %101 = vmatprep.subr.mxu0 0.0
  %102 = vmatpush2.msra.mxu0 0.0
  %103 = vmatprep.subr.mxu0 0.0
  %104 = vmatpush2.msra.mxu0 0.0
  %105 = vmatprep.subr.mxu0 0.0
  %106 = vmatpush2.msra.mxu0 0.0
  %107 = vmatprep.subr.mxu0 0.0
  %108 = vmatpush2.msra.mxu0 0.0
  %109 = vmatprep.subr.mxu0 0.0
  %110 = vmatpush2.msra.mxu0 0.0
  %111 = vmatprep.subr.mxu0 0.0
  %112 = vmatpush2.msra.mxu0 0.0
  %113 = vmatprep.mubr.f32.mxu0 0.0
  %114 = vmatmul.mubr.f32.gmra.mxu0 %v47
  %v115 = vpop.f32.mrf.mxu0
  %v116 = vadd.f32 0.0, %v115
  %v117 = vpop.f32.mrf.mxu0
  %118 = vdwg.mxu0
  %s119 = scalar_lea.vmem %s2, 16
  %v120 = vld [vmem:[%s119] sm:$0xff]
  %v121 = vld [vmem:[%s119 + $0x8] sm:$0xff]
  %vm122 = vcmask 64512
  %v124 = vsel %vm122, %v120, 0
  %v127 = vsel %vm122, %v121, 0
  %129 = vmatprep.subr.mxu0 0.0
  %130 = vmatpush1.msra.mxu0 0.0
  %131 = vmatprep.subr.mxu0 0.0
  %132 = vmatpush1.msra.mxu0 0.0
  %133 = vmatprep.subr.mxu0 0.0
  %134 = vmatpush1.msra.mxu0 0.0
  %135 = vmatprep.subr.mxu0 0.0
  %136 = vmatpush1.msra.mxu0 0.0
  %137 = vmatprep.subr.mxu0 0.0
  %138 = vmatpush1.msra.mxu0 0.0
  %139 = vmatprep.subr.mxu0 0.0
  %140 = vmatpush1.msra.mxu0 0.0
  %141 = vmatprep.subr.mxu0 0.0
  %142 = vmatpush1.msra.mxu0 0.0
  %143 = vmatprep.subr.mxu0 0.0
  %144 = vmatpush1.msra.mxu0 0.0
  %145 = vmatprep.subr.mxu0 0.0
  %146 = vmatpush1.msra.mxu0 0.0
  %147 = vmatprep.subr.mxu0 0.0
  %148 = vmatpush1.msra.mxu0 0.0
  %149 = vmatprep.subr.mxu0 0.0
  %150 = vmatpush1.msra.mxu0 0.0
  %151 = vmatprep.subr.mxu0 0.0
  %152 = vmatpush1.msra.mxu0 0.0
  %153 = vmatprep.subr.mxu0 0.0
  %154 = vmatpush1.msra.mxu0 0.0
  %155 = vmatprep.subr.mxu0 0.0
  %156 = vmatpush1.msra.mxu0 0.0
  %157 = vmatprep.subr.mxu0 0.0
  %158 = vmatpush1.msra.mxu0 0.0
  %159 = vmatprep.subr.mxu0 0.0
  %160 = vmatpush1.msra.mxu0 %v116
  %161 = vmatprep.subr.mxu0 0.0
  %162 = vmatpush2.msra.mxu0 0.0
  %163 = vmatprep.subr.mxu0 0.0
  %164 = vmatpush2.msra.mxu0 0.0
  %165 = vmatprep.subr.mxu0 0.0
  %166 = vmatpush2.msra.mxu0 0.0
  %167 = vmatprep.subr.mxu0 0.0
  %168 = vmatpush2.msra.mxu0 0.0
  %169 = vmatprep.subr.mxu0 0.0
  %170 = vmatpush2.msra.mxu0 0.0
  %171 = vmatprep.subr.mxu0 0.0
  %172 = vmatpush2.msra.mxu0 0.0
  %173 = vmatprep.subr.mxu0 0.0
  %174 = vmatpush2.msra.mxu0 0.0
  %175 = vmatprep.subr.mxu0 0.0
  %176 = vmatpush2.msra.mxu0 0.0
  %177 = vmatprep.subr.mxu0 0.0
  %178 = vmatpush2.msra.mxu0 0.0
  %179 = vmatprep.subr.mxu0 0.0
  %180 = vmatpush2.msra.mxu0 0.0
  %181 = vmatprep.subr.mxu0 0.0
  %182 = vmatpush2.msra.mxu0 0.0
  %183 = vmatprep.subr.mxu0 0.0
  %184 = vmatpush2.msra.mxu0 0.0
  %185 = vmatprep.subr.mxu0 0.0
  %186 = vmatpush2.msra.mxu0 0.0
  %187 = vmatprep.subr.mxu0 0.0
  %188 = vmatpush2.msra.mxu0 0.0
  %189 = vmatprep.subr.mxu0 0.0
  %190 = vmatpush2.msra.mxu0 0.0
  %191 = vmatprep.subr.mxu0 0.0
  %192 = vmatpush2.msra.mxu0 0.0
  %193 = vmatprep.mubr.f32.mxu0 0.0
  %194 = vmatmul.mubr.f32.gmra.mxu0 %v124
  %v195 = vpop.f32.mrf.mxu0
  %v196 = vadd.f32 0.0, %v195
  %v197 = vpop.f32.mrf.mxu0
  %198 = vmatprep.mubr.f32.mxu0 0.0
  %199 = vmatmul.mubr.f32.gmra.mxu0 %v127
  %v200 = vpop.f32.mrf.mxu0
  %v201 = vadd.f32 0.0, %v200
  %v202 = vpop.f32.mrf.mxu0
  %203 = vdwg.mxu0
  %v205 = vsel %vm122, %v35, 0
  %v208 = vsel %vm122, %v36, 0
  %210 = vmatprep.subr.mxu0 0.0
  %211 = vmatpush1.msra.mxu0 0.0
  %212 = vmatprep.subr.mxu0 0.0
  %213 = vmatpush1.msra.mxu0 0.0
  %214 = vmatprep.subr.mxu0 0.0
  %215 = vmatpush1.msra.mxu0 0.0
  %216 = vmatprep.subr.mxu0 0.0
  %217 = vmatpush1.msra.mxu0 0.0
  %218 = vmatprep.subr.mxu0 0.0
  %219 = vmatpush1.msra.mxu0 0.0
  %220 = vmatprep.subr.mxu0 0.0
  %221 = vmatpush1.msra.mxu0 0.0
  %222 = vmatprep.subr.mxu0 0.0
  %223 = vmatpush1.msra.mxu0 0.0
  %224 = vmatprep.subr.mxu0 0.0
  %225 = vmatpush1.msra.mxu0 0.0
  %226 = vmatprep.subr.mxu0 0.0
  %227 = vmatpush1.msra.mxu0 0.0
  %228 = vmatprep.subr.mxu0 0.0
  %229 = vmatpush1.msra.mxu0 0.0
  %230 = vmatprep.subr.mxu0 0.0
  %231 = vmatpush1.msra.mxu0 0.0
  %232 = vmatprep.subr.mxu0 0.0
  %233 = vmatpush1.msra.mxu0 0.0
  %234 = vmatprep.subr.mxu0 0.0
  %235 = vmatpush1.msra.mxu0 0.0
  %236 = vmatprep.subr.mxu0 0.0
  %237 = vmatpush1.msra.mxu0 0.0
  %238 = vmatprep.subr.mxu0 0.0
  %239 = vmatpush1.msra.mxu0 0.0
  %240 = vmatprep.subr.mxu0 0.0
  %241 = vmatpush1.msra.mxu0 %v32
  %242 = vmatprep.subr.mxu0 0.0
  %243 = vmatpush2.msra.mxu0 0.0
  %244 = vmatprep.subr.mxu0 0.0
  %245 = vmatpush2.msra.mxu0 0.0
  %246 = vmatprep.subr.mxu0 0.0
  %247 = vmatpush2.msra.mxu0 0.0
  %248 = vmatprep.subr.mxu0 0.0
  %249 = vmatpush2.msra.mxu0 0.0
  %250 = vmatprep.subr.mxu0 0.0
  %251 = vmatpush2.msra.mxu0 0.0
  %252 = vmatprep.subr.mxu0 0.0
  %253 = vmatpush2.msra.mxu0 0.0
  %254 = vmatprep.subr.mxu0 0.0
  %255 = vmatpush2.msra.mxu0 0.0
  %256 = vmatprep.subr.mxu0 0.0
  %257 = vmatpush2.msra.mxu0 0.0
  %258 = vmatprep.subr.mxu0 0.0
  %259 = vmatpush2.msra.mxu0 0.0
  %260 = vmatprep.subr.mxu0 0.0
  %261 = vmatpush2.msra.mxu0 0.0
  %262 = vmatprep.subr.mxu0 0.0
  %263 = vmatpush2.msra.mxu0 0.0
  %264 = vmatprep.subr.mxu0 0.0
  %265 = vmatpush2.msra.mxu0 0.0
  %266 = vmatprep.subr.mxu0 0.0
  %267 = vmatpush2.msra.mxu0 0.0
  %268 = vmatprep.subr.mxu0 0.0
  %269 = vmatpush2.msra.mxu0 0.0
  %270 = vmatprep.subr.mxu0 0.0
  %271 = vmatpush2.msra.mxu0 0.0
  %272 = vmatprep.subr.mxu0 0.0
  %273 = vmatpush2.msra.mxu0 0.0
  %274 = vmatprep.mubr.f32.mxu0 0.0
  %275 = vmatmul.mubr.f32.gmra.mxu0 %v205
  %v276 = vpop.f32.mrf.mxu0
  %v277 = vadd.f32 %v196, %v276
  %v278 = vpop.f32.mrf.mxu0
  %279 = vmatprep.mubr.f32.mxu0 0.0
  %280 = vmatmul.mubr.f32.gmra.mxu0 %v208
  %v281 = vpop.f32.mrf.mxu0
  %v282 = vadd.f32 %v201, %v281
  %v283 = vpop.f32.mrf.mxu0
  %284 = vdwg.mxu0
  %v286 = vsel %vm45, %v116, 0
  %288 = vmatprep.subr.mxu0 0.0
  %289 = vmatpush1.msra.mxu0 0.0
  %290 = vmatprep.subr.mxu0 0.0
  %291 = vmatpush1.msra.mxu0 0.0
  %292 = vmatprep.subr.mxu0 0.0
  %293 = vmatpush1.msra.mxu0 0.0
  %294 = vmatprep.subr.mxu0 0.0
  %295 = vmatpush1.msra.mxu0 0.0
  %296 = vmatprep.subr.mxu0 0.0
  %297 = vmatpush1.msra.mxu0 0.0
  %298 = vmatprep.subr.mxu0 0.0
  %299 = vmatpush1.msra.mxu0 0.0
  %300 = vmatprep.subr.mxu0 0.0
  %301 = vmatpush1.msra.mxu0 0.0
  %302 = vmatprep.subr.mxu0 0.0
  %303 = vmatpush1.msra.mxu0 0.0
  %304 = vmatprep.subr.mxu0 0.0
  %305 = vmatpush1.msra.mxu0 %v44
  %306 = vmatprep.subr.mxu0 0.0
  %307 = vmatpush1.msra.mxu0 %v43
  %308 = vmatprep.subr.mxu0 0.0
  %309 = vmatpush1.msra.mxu0 %v42
  %310 = vmatprep.subr.mxu0 0.0
  %311 = vmatpush1.msra.mxu0 %v41
  %312 = vmatprep.subr.mxu0 0.0
  %313 = vmatpush1.msra.mxu0 %v40
  %314 = vmatprep.subr.mxu0 0.0
  %315 = vmatpush1.msra.mxu0 %v39
  %316 = vmatprep.subr.mxu0 0.0
  %317 = vmatpush1.msra.mxu0 %v38
  %318 = vmatprep.subr.mxu0 0.0
  %319 = vmatpush1.msra.mxu0 %v37
  %320 = vmatprep.subr.mxu0 0.0
  %321 = vmatpush2.msra.mxu0 0.0
  %322 = vmatprep.subr.mxu0 0.0
  %323 = vmatpush2.msra.mxu0 0.0
  %324 = vmatprep.subr.mxu0 0.0
  %325 = vmatpush2.msra.mxu0 0.0
  %326 = vmatprep.subr.mxu0 0.0
  %327 = vmatpush2.msra.mxu0 0.0
  %328 = vmatprep.subr.mxu0 0.0
  %329 = vmatpush2.msra.mxu0 0.0
  %330 = vmatprep.subr.mxu0 0.0
  %331 = vmatpush2.msra.mxu0 0.0
  %332 = vmatprep.subr.mxu0 0.0
  %333 = vmatpush2.msra.mxu0 0.0
  %334 = vmatprep.subr.mxu0 0.0
  %335 = vmatpush2.msra.mxu0 0.0
  %336 = vmatprep.subr.mxu0 0.0
  %337 = vmatpush2.msra.mxu0 0.0
  %338 = vmatprep.subr.mxu0 0.0
  %339 = vmatpush2.msra.mxu0 0.0
  %340 = vmatprep.subr.mxu0 0.0
  %341 = vmatpush2.msra.mxu0 0.0
  %342 = vmatprep.subr.mxu0 0.0
  %343 = vmatpush2.msra.mxu0 0.0
  %344 = vmatprep.subr.mxu0 0.0
  %345 = vmatpush2.msra.mxu0 0.0
  %346 = vmatprep.subr.mxu0 0.0
  %347 = vmatpush2.msra.mxu0 0.0
  %348 = vmatprep.subr.mxu0 0.0
  %349 = vmatpush2.msra.mxu0 0.0
  %350 = vmatprep.subr.mxu0 0.0
  %351 = vmatpush2.msra.mxu0 0.0
  %352 = vmatprep.mubr.f32.mxu0 0.0
  %353 = vmatmul.mubr.f32.gmra.mxu0 %v286
  %v354 = vpop.f32.mrf.mxu0
  %v355 = vadd.f32 0.0, %v354
  %v356 = vpop.f32.mrf.mxu0
  %357 = vdwg.mxu0
  %v358 = vmul.f32 %v355, 2.0
  %v359 = vsub.f32 %v358, %v32
  %s360 = scalar_lea.vmem %s2, 32
  %v361 = vld [vmem:[%s360] sm:$0xff]
  %v362 = vld [vmem:[%s360 + $0x8] sm:$0xff]
  %v364 = vsel %vm122, %v361, 0
  %v367 = vsel %vm122, %v362, 0
  %369 = vmatprep.subr.mxu0 0.0
  %370 = vmatpush1.msra.mxu0 0.0
  %371 = vmatprep.subr.mxu0 0.0
  %372 = vmatpush1.msra.mxu0 0.0
  %373 = vmatprep.subr.mxu0 0.0
  %374 = vmatpush1.msra.mxu0 0.0
  %375 = vmatprep.subr.mxu0 0.0
  %376 = vmatpush1.msra.mxu0 0.0
  %377 = vmatprep.subr.mxu0 0.0
  %378 = vmatpush1.msra.mxu0 0.0
  %379 = vmatprep.subr.mxu0 0.0
  %380 = vmatpush1.msra.mxu0 0.0
  %381 = vmatprep.subr.mxu0 0.0
  %382 = vmatpush1.msra.mxu0 0.0
  %383 = vmatprep.subr.mxu0 0.0
  %384 = vmatpush1.msra.mxu0 0.0
  %385 = vmatprep.subr.mxu0 0.0
  %386 = vmatpush1.msra.mxu0 0.0
  %387 = vmatprep.subr.mxu0 0.0
  %388 = vmatpush1.msra.mxu0 0.0
  %389 = vmatprep.subr.mxu0 0.0
  %390 = vmatpush1.msra.mxu0 0.0
  %391 = vmatprep.subr.mxu0 0.0
  %392 = vmatpush1.msra.mxu0 0.0
  %393 = vmatprep.subr.mxu0 0.0
  %394 = vmatpush1.msra.mxu0 0.0
  %395 = vmatprep.subr.mxu0 0.0
  %396 = vmatpush1.msra.mxu0 0.0
  %397 = vmatprep.subr.mxu0 0.0
  %398 = vmatpush1.msra.mxu0 0.0
  %399 = vmatprep.subr.mxu0 0.0
  %400 = vmatpush1.msra.mxu0 %v359
  %401 = vmatprep.subr.mxu0 0.0
  %402 = vmatpush2.msra.mxu0 0.0
  %403 = vmatprep.subr.mxu0 0.0
  %404 = vmatpush2.msra.mxu0 0.0
  %405 = vmatprep.subr.mxu0 0.0
  %406 = vmatpush2.msra.mxu0 0.0
  %407 = vmatprep.subr.mxu0 0.0
  %408 = vmatpush2.msra.mxu0 0.0
  %409 = vmatprep.subr.mxu0 0.0
  %410 = vmatpush2.msra.mxu0 0.0
  %411 = vmatprep.subr.mxu0 0.0
  %412 = vmatpush2.msra.mxu0 0.0
  %413 = vmatprep.subr.mxu0 0.0
  %414 = vmatpush2.msra.mxu0 0.0
  %415 = vmatprep.subr.mxu0 0.0
  %416 = vmatpush2.msra.mxu0 0.0
  %417 = vmatprep.subr.mxu0 0.0
  %418 = vmatpush2.msra.mxu0 0.0
  %419 = vmatprep.subr.mxu0 0.0
  %420 = vmatpush2.msra.mxu0 0.0
  %421 = vmatprep.subr.mxu0 0.0
  %422 = vmatpush2.msra.mxu0 0.0
  %423 = vmatprep.subr.mxu0 0.0
  %424 = vmatpush2.msra.mxu0 0.0
  %425 = vmatprep.subr.mxu0 0.0
  %426 = vmatpush2.msra.mxu0 0.0
  %427 = vmatprep.subr.mxu0 0.0
  %428 = vmatpush2.msra.mxu0 0.0
  %429 = vmatprep.subr.mxu0 0.0
  %430 = vmatpush2.msra.mxu0 0.0
  %431 = vmatprep.subr.mxu0 0.0
  %432 = vmatpush2.msra.mxu0 0.0
  %433 = vmatprep.mubr.f32.mxu0 0.0
  %434 = vmatmul.mubr.f32.gmra.mxu0 %v364
  %v435 = vpop.f32.mrf.mxu0
  %v436 = vadd.f32 0.0, %v435
  %v437 = vpop.f32.mrf.mxu0
  %438 = vmatprep.mubr.f32.mxu0 0.0
  %439 = vmatmul.mubr.f32.gmra.mxu0 %v367
  %v440 = vpop.f32.mrf.mxu0
  %v441 = vadd.f32 0.0, %v440
  %v442 = vpop.f32.mrf.mxu0
  %443 = vdwg.mxu0
  %v444 = vadd.f32 %v277, %v436
  %v445 = vadd.f32 %v282, %v441
  %447 = vset.pattern.permute.xlu0 0
  %448 = vperm.xlu0 %447, %v33
  %v449 = vpop.permute.xlu0 %448
  %452 = vset.pattern.permute.xlu0 0
  %453 = vperm.xlu0 %452, %v34
  %v454 = vpop.permute.xlu0 %453
  %v456 = vadd.f32 %v444, %v449
  %v457 = vadd.f32 %v445, %v454
  %v458 = vmax.f32 %v456, 0.0
  %v459 = vmax.f32 %v457, 0.0
  %v460 = vld [vmem:[%s4] sm:$0xff]
  %v461 = vld [vmem:[%s4 + $0x8] sm:$0xff]
  %v462 = vld [vmem:[%s4 + $0x10] sm:$0xff]
  %v463 = vld [vmem:[%s4 + $0x18] sm:$0xff]
  %v464 = vld [vmem:[%s4 + $0x20] sm:$0xff]
  %v465 = vld [vmem:[%s4 + $0x28] sm:$0xff]
  %v466 = vld [vmem:[%s4 + $0x30] sm:$0xff]
  %v467 = vld [vmem:[%s4 + $0x38] sm:$0xff]
  %v469 = vsel %vm45, %v458, 0
  %v472 = vsel %vm45, %v459, 0
  %474 = vmatprep.subr.mxu0 0.0
  %475 = vmatpush1.msra.mxu0 0.0
  %476 = vmatprep.subr.mxu0 0.0
  %477 = vmatpush1.msra.mxu0 0.0
  %478 = vmatprep.subr.mxu0 0.0
  %479 = vmatpush1.msra.mxu0 0.0
  %480 = vmatprep.subr.mxu0 0.0
  %481 = vmatpush1.msra.mxu0 0.0
  %482 = vmatprep.subr.mxu0 0.0
  %483 = vmatpush1.msra.mxu0 0.0
  %484 = vmatprep.subr.mxu0 0.0
  %485 = vmatpush1.msra.mxu0 0.0
  %486 = vmatprep.subr.mxu0 0.0
  %487 = vmatpush1.msra.mxu0 0.0
  %488 = vmatprep.subr.mxu0 0.0
  %489 = vmatpush1.msra.mxu0 0.0
  %490 = vmatprep.subr.mxu0 0.0
  %491 = vmatpush1.msra.mxu0 %v467
  %492 = vmatprep.subr.mxu0 0.0
  %493 = vmatpush1.msra.mxu0 %v466
  %494 = vmatprep.subr.mxu0 0.0
  %495 = vmatpush1.msra.mxu0 %v465
  %496 = vmatprep.subr.mxu0 0.0
  %497 = vmatpush1.msra.mxu0 %v464
  %498 = vmatprep.subr.mxu0 0.0
  %499 = vmatpush1.msra.mxu0 %v463
  %500 = vmatprep.subr.mxu0 0.0
  %501 = vmatpush1.msra.mxu0 %v462
  %502 = vmatprep.subr.mxu0 0.0
  %503 = vmatpush1.msra.mxu0 %v461
  %504 = vmatprep.subr.mxu0 0.0
  %505 = vmatpush1.msra.mxu0 %v460
  %506 = vmatprep.subr.mxu0 0.0
  %507 = vmatpush2.msra.mxu0 0.0
  %508 = vmatprep.subr.mxu0 0.0
  %509 = vmatpush2.msra.mxu0 0.0
  %510 = vmatprep.subr.mxu0 0.0
  %511 = vmatpush2.msra.mxu0 0.0
  %512 = vmatprep.subr.mxu0 0.0
  %513 = vmatpush2.msra.mxu0 0.0
  %514 = vmatprep.subr.mxu0 0.0
  %515 = vmatpush2.msra.mxu0 0.0
  %516 = vmatprep.subr.mxu0 0.0
  %517 = vmatpush2.msra.mxu0 0.0
  %518 = vmatprep.subr.mxu0 0.0
  %519 = vmatpush2.msra.mxu0 0.0
  %520 = vmatprep.subr.mxu0 0.0
  %521 = vmatpush2.msra.mxu0 0.0
  %522 = vmatprep.subr.mxu0 0.0
  %523 = vmatpush2.msra.mxu0 0.0
  %524 = vmatprep.subr.mxu0 0.0
  %525 = vmatpush2.msra.mxu0 0.0
  %526 = vmatprep.subr.mxu0 0.0
  %527 = vmatpush2.msra.mxu0 0.0
  %528 = vmatprep.subr.mxu0 0.0
  %529 = vmatpush2.msra.mxu0 0.0
  %530 = vmatprep.subr.mxu0 0.0
  %531 = vmatpush2.msra.mxu0 0.0
  %532 = vmatprep.subr.mxu0 0.0
  %533 = vmatpush2.msra.mxu0 0.0
  %534 = vmatprep.subr.mxu0 0.0
  %535 = vmatpush2.msra.mxu0 0.0
  %536 = vmatprep.subr.mxu0 0.0
  %537 = vmatpush2.msra.mxu0 0.0
  %538 = vmatprep.mubr.f32.mxu0 0.0
  %539 = vmatmul.mubr.f32.gmra.mxu0 %v469
  %v540 = vpop.f32.mrf.mxu0
  %v541 = vadd.f32 0.0, %v540
  %v542 = vpop.f32.mrf.mxu0
  %543 = vmatprep.mubr.f32.mxu0 0.0
  %544 = vmatmul.mubr.f32.gmra.mxu0 %v472
  %v545 = vpop.f32.mrf.mxu0
  %v546 = vadd.f32 0.0, %v545
  %v547 = vpop.f32.mrf.mxu0
  %548 = vdwg.mxu0
  %s549 = scalar_lea.vmem %s4, 64
  %v550 = vld [vmem:[%s549] sm:$0xff]
  %v551 = vld [vmem:[%s549 + $0x8] sm:$0xff]
  %v552 = vld [vmem:[%s549 + $0x10] sm:$0xff]
  %v553 = vld [vmem:[%s549 + $0x18] sm:$0xff]
  %v554 = vld [vmem:[%s549 + $0x20] sm:$0xff]
  %v555 = vld [vmem:[%s549 + $0x28] sm:$0xff]
  %v556 = vld [vmem:[%s549 + $0x30] sm:$0xff]
  %v557 = vld [vmem:[%s549 + $0x38] sm:$0xff]
  %558 = vmatprep.subr.mxu0 0.0
  %559 = vmatpush1.msra.mxu0 0.0
  %560 = vmatprep.subr.mxu0 0.0
  %561 = vmatpush1.msra.mxu0 0.0
  %562 = vmatprep.subr.mxu0 0.0
  %563 = vmatpush1.msra.mxu0 0.0
  %564 = vmatprep.subr.mxu0 0.0
  %565 = vmatpush1.msra.mxu0 0.0
  %566 = vmatprep.subr.mxu0 0.0
  %567 = vmatpush1.msra.mxu0 0.0
  %568 = vmatprep.subr.mxu0 0.0
  %569 = vmatpush1.msra.mxu0 0.0
  %570 = vmatprep.subr.mxu0 0.0
  %571 = vmatpush1.msra.mxu0 0.0
  %572 = vmatprep.subr.mxu0 0.0
  %573 = vmatpush1.msra.mxu0 0.0
  %574 = vmatprep.subr.mxu0 0.0
  %575 = vmatpush1.msra.mxu0 %v557
  %576 = vmatprep.subr.mxu0 0.0
  %577 = vmatpush1.msra.mxu0 %v556
  %578 = vmatprep.subr.mxu0 0.0
  %579 = vmatpush1.msra.mxu0 %v555
  %580 = vmatprep.subr.mxu0 0.0
  %581 = vmatpush1.msra.mxu0 %v554
  %582 = vmatprep.subr.mxu0 0.0
  %583 = vmatpush1.msra.mxu0 %v553
  %584 = vmatprep.subr.mxu0 0.0
  %585 = vmatpush1.msra.mxu0 %v552
  %586 = vmatprep.subr.mxu0 0.0
  %587 = vmatpush1.msra.mxu0 %v551
  %588 = vmatprep.subr.mxu0 0.0
  %589 = vmatpush1.msra.mxu0 %v550
  %590 = vmatprep.subr.mxu0 0.0
  %591 = vmatpush2.msra.mxu0 0.0
  %592 = vmatprep.subr.mxu0 0.0
  %593 = vmatpush2.msra.mxu0 0.0
  %594 = vmatprep.subr.mxu0 0.0
  %595 = vmatpush2.msra.mxu0 0.0
  %596 = vmatprep.subr.mxu0 0.0
  %597 = vmatpush2.msra.mxu0 0.0
  %598 = vmatprep.subr.mxu0 0.0
  %599 = vmatpush2.msra.mxu0 0.0
  %600 = vmatprep.subr.mxu0 0.0
  %601 = vmatpush2.msra.mxu0 0.0
  %602 = vmatprep.subr.mxu0 0.0
  %603 = vmatpush2.msra.mxu0 0.0
  %604 = vmatprep.subr.mxu0 0.0
  %605 = vmatpush2.msra.mxu0 0.0
  %606 = vmatprep.subr.mxu0 0.0
  %607 = vmatpush2.msra.mxu0 0.0
  %608 = vmatprep.subr.mxu0 0.0
  %609 = vmatpush2.msra.mxu0 0.0
  %610 = vmatprep.subr.mxu0 0.0
  %611 = vmatpush2.msra.mxu0 0.0
  %612 = vmatprep.subr.mxu0 0.0
  %613 = vmatpush2.msra.mxu0 0.0
  %614 = vmatprep.subr.mxu0 0.0
  %615 = vmatpush2.msra.mxu0 0.0
  %616 = vmatprep.subr.mxu0 0.0
  %617 = vmatpush2.msra.mxu0 0.0
  %618 = vmatprep.subr.mxu0 0.0
  %619 = vmatpush2.msra.mxu0 0.0
  %620 = vmatprep.subr.mxu0 0.0
  %621 = vmatpush2.msra.mxu0 0.0
  %622 = vmatprep.mubr.f32.mxu0 0.0
  %623 = vmatmul.mubr.f32.gmra.mxu0 %v469
  %v624 = vpop.f32.mrf.mxu0
  %v625 = vadd.f32 0.0, %v624
  %v626 = vpop.f32.mrf.mxu0
  %627 = vmatprep.mubr.f32.mxu0 0.0
  %628 = vmatmul.mubr.f32.gmra.mxu0 %v472
  %v629 = vpop.f32.mrf.mxu0
  %v630 = vadd.f32 0.0, %v629
  %v631 = vpop.f32.mrf.mxu0
  %632 = vdwg.mxu0
  %v633 = vmax.f32 %v541, %v625
  %v634 = vmax.f32 %v546, %v630
  %s635 = scalar_lea.vmem %s4, 128
  %v636 = vld [vmem:[%s635] sm:$0xff]
  %v637 = vld [vmem:[%s635 + $0x8] sm:$0xff]
  %v638 = vld [vmem:[%s635 + $0x10] sm:$0xff]
  %v639 = vld [vmem:[%s635 + $0x18] sm:$0xff]
  %v640 = vld [vmem:[%s635 + $0x20] sm:$0xff]
  %v641 = vld [vmem:[%s635 + $0x28] sm:$0xff]
  %v642 = vld [vmem:[%s635 + $0x30] sm:$0xff]
  %v643 = vld [vmem:[%s635 + $0x38] sm:$0xff]
  %644 = vmatprep.subr.mxu0 0.0
  %645 = vmatpush1.msra.mxu0 0.0
  %646 = vmatprep.subr.mxu0 0.0
  %647 = vmatpush1.msra.mxu0 0.0
  %648 = vmatprep.subr.mxu0 0.0
  %649 = vmatpush1.msra.mxu0 0.0
  %650 = vmatprep.subr.mxu0 0.0
  %651 = vmatpush1.msra.mxu0 0.0
  %652 = vmatprep.subr.mxu0 0.0
  %653 = vmatpush1.msra.mxu0 0.0
  %654 = vmatprep.subr.mxu0 0.0
  %655 = vmatpush1.msra.mxu0 0.0
  %656 = vmatprep.subr.mxu0 0.0
  %657 = vmatpush1.msra.mxu0 0.0
  %658 = vmatprep.subr.mxu0 0.0
  %659 = vmatpush1.msra.mxu0 0.0
  %660 = vmatprep.subr.mxu0 0.0
  %661 = vmatpush1.msra.mxu0 %v643
  %662 = vmatprep.subr.mxu0 0.0
  %663 = vmatpush1.msra.mxu0 %v642
  %664 = vmatprep.subr.mxu0 0.0
  %665 = vmatpush1.msra.mxu0 %v641
  %666 = vmatprep.subr.mxu0 0.0
  %667 = vmatpush1.msra.mxu0 %v640
  %668 = vmatprep.subr.mxu0 0.0
  %669 = vmatpush1.msra.mxu0 %v639
  %670 = vmatprep.subr.mxu0 0.0
  %671 = vmatpush1.msra.mxu0 %v638
  %672 = vmatprep.subr.mxu0 0.0
  %673 = vmatpush1.msra.mxu0 %v637
  %674 = vmatprep.subr.mxu0 0.0
  %675 = vmatpush1.msra.mxu0 %v636
  %676 = vmatprep.subr.mxu0 0.0
  %677 = vmatpush2.msra.mxu0 0.0
  %678 = vmatprep.subr.mxu0 0.0
  %679 = vmatpush2.msra.mxu0 0.0
  %680 = vmatprep.subr.mxu0 0.0
  %681 = vmatpush2.msra.mxu0 0.0
  %682 = vmatprep.subr.mxu0 0.0
  %683 = vmatpush2.msra.mxu0 0.0
  %684 = vmatprep.subr.mxu0 0.0
  %685 = vmatpush2.msra.mxu0 0.0
  %686 = vmatprep.subr.mxu0 0.0
  %687 = vmatpush2.msra.mxu0 0.0
  %688 = vmatprep.subr.mxu0 0.0
  %689 = vmatpush2.msra.mxu0 0.0
  %690 = vmatprep.subr.mxu0 0.0
  %691 = vmatpush2.msra.mxu0 0.0
  %692 = vmatprep.subr.mxu0 0.0
  %693 = vmatpush2.msra.mxu0 0.0
  %694 = vmatprep.subr.mxu0 0.0
  %695 = vmatpush2.msra.mxu0 0.0
  %696 = vmatprep.subr.mxu0 0.0
  %697 = vmatpush2.msra.mxu0 0.0
  %698 = vmatprep.subr.mxu0 0.0
  %699 = vmatpush2.msra.mxu0 0.0
  %700 = vmatprep.subr.mxu0 0.0
  %701 = vmatpush2.msra.mxu0 0.0
  %702 = vmatprep.subr.mxu0 0.0
  %703 = vmatpush2.msra.mxu0 0.0
  %704 = vmatprep.subr.mxu0 0.0
  %705 = vmatpush2.msra.mxu0 0.0
  %706 = vmatprep.subr.mxu0 0.0
  %707 = vmatpush2.msra.mxu0 0.0
  %708 = vmatprep.mubr.f32.mxu0 0.0
  %709 = vmatmul.mubr.f32.gmra.mxu0 %v469
  %v710 = vpop.f32.mrf.mxu0
  %v711 = vadd.f32 0.0, %v710
  %v712 = vpop.f32.mrf.mxu0
  %713 = vmatprep.mubr.f32.mxu0 0.0
  %714 = vmatmul.mubr.f32.gmra.mxu0 %v472
  %v715 = vpop.f32.mrf.mxu0
  %v716 = vadd.f32 0.0, %v715
  %v717 = vpop.f32.mrf.mxu0
  %718 = vdwg.mxu0
  %v719 = vmax.f32 %v633, %v711
  %v720 = vmax.f32 %v634, %v716
  %s721 = scalar_lea.vmem %s4, 192
  %v722 = vld [vmem:[%s721] sm:$0xff]
  %v723 = vld [vmem:[%s721 + $0x8] sm:$0xff]
  %v724 = vld [vmem:[%s721 + $0x10] sm:$0xff]
  %v725 = vld [vmem:[%s721 + $0x18] sm:$0xff]
  %v726 = vld [vmem:[%s721 + $0x20] sm:$0xff]
  %v727 = vld [vmem:[%s721 + $0x28] sm:$0xff]
  %v728 = vld [vmem:[%s721 + $0x30] sm:$0xff]
  %v729 = vld [vmem:[%s721 + $0x38] sm:$0xff]
  %730 = vmatprep.subr.mxu0 0.0
  %731 = vmatpush1.msra.mxu0 0.0
  %732 = vmatprep.subr.mxu0 0.0
  %733 = vmatpush1.msra.mxu0 0.0
  %734 = vmatprep.subr.mxu0 0.0
  %735 = vmatpush1.msra.mxu0 0.0
  %736 = vmatprep.subr.mxu0 0.0
  %737 = vmatpush1.msra.mxu0 0.0
  %738 = vmatprep.subr.mxu0 0.0
  %739 = vmatpush1.msra.mxu0 0.0
  %740 = vmatprep.subr.mxu0 0.0
  %741 = vmatpush1.msra.mxu0 0.0
  %742 = vmatprep.subr.mxu0 0.0
  %743 = vmatpush1.msra.mxu0 0.0
  %744 = vmatprep.subr.mxu0 0.0
  %745 = vmatpush1.msra.mxu0 0.0
  %746 = vmatprep.subr.mxu0 0.0
  %747 = vmatpush1.msra.mxu0 %v729
  %748 = vmatprep.subr.mxu0 0.0
  %749 = vmatpush1.msra.mxu0 %v728
  %750 = vmatprep.subr.mxu0 0.0
  %751 = vmatpush1.msra.mxu0 %v727
  %752 = vmatprep.subr.mxu0 0.0
  %753 = vmatpush1.msra.mxu0 %v726
  %754 = vmatprep.subr.mxu0 0.0
  %755 = vmatpush1.msra.mxu0 %v725
  %756 = vmatprep.subr.mxu0 0.0
  %757 = vmatpush1.msra.mxu0 %v724
  %758 = vmatprep.subr.mxu0 0.0
  %759 = vmatpush1.msra.mxu0 %v723
  %760 = vmatprep.subr.mxu0 0.0
  %761 = vmatpush1.msra.mxu0 %v722
  %762 = vmatprep.subr.mxu0 0.0
  %763 = vmatpush2.msra.mxu0 0.0
  %764 = vmatprep.subr.mxu0 0.0
  %765 = vmatpush2.msra.mxu0 0.0
  %766 = vmatprep.subr.mxu0 0.0
  %767 = vmatpush2.msra.mxu0 0.0
  %768 = vmatprep.subr.mxu0 0.0
  %769 = vmatpush2.msra.mxu0 0.0
  %770 = vmatprep.subr.mxu0 0.0
  %771 = vmatpush2.msra.mxu0 0.0
  %772 = vmatprep.subr.mxu0 0.0
  %773 = vmatpush2.msra.mxu0 0.0
  %774 = vmatprep.subr.mxu0 0.0
  %775 = vmatpush2.msra.mxu0 0.0
  %776 = vmatprep.subr.mxu0 0.0
  %777 = vmatpush2.msra.mxu0 0.0
  %778 = vmatprep.subr.mxu0 0.0
  %779 = vmatpush2.msra.mxu0 0.0
  %780 = vmatprep.subr.mxu0 0.0
  %781 = vmatpush2.msra.mxu0 0.0
  %782 = vmatprep.subr.mxu0 0.0
  %783 = vmatpush2.msra.mxu0 0.0
  %784 = vmatprep.subr.mxu0 0.0
  %785 = vmatpush2.msra.mxu0 0.0
  %786 = vmatprep.subr.mxu0 0.0
  %787 = vmatpush2.msra.mxu0 0.0
  %788 = vmatprep.subr.mxu0 0.0
  %789 = vmatpush2.msra.mxu0 0.0
  %790 = vmatprep.subr.mxu0 0.0
  %791 = vmatpush2.msra.mxu0 0.0
  %792 = vmatprep.subr.mxu0 0.0
  %793 = vmatpush2.msra.mxu0 0.0
  %794 = vmatprep.mubr.f32.mxu0 0.0
  %795 = vmatmul.mubr.f32.gmra.mxu0 %v469
  %v796 = vpop.f32.mrf.mxu0
  %v797 = vadd.f32 0.0, %v796
  %v798 = vpop.f32.mrf.mxu0
  %799 = vmatprep.mubr.f32.mxu0 0.0
  %800 = vmatmul.mubr.f32.gmra.mxu0 %v472
  %v801 = vpop.f32.mrf.mxu0
  %v802 = vadd.f32 0.0, %v801
  %v803 = vpop.f32.mrf.mxu0
  %804 = vdwg.mxu0
  %v805 = vmax.f32 %v719, %v797
  %v806 = vmax.f32 %v720, %v802
  %v807 = vld [vmem:[%s7] sm:$0xff]
  %v808 = vld [vmem:[%s7 + $0x8] sm:$0xff]
  %v809 = vld [vmem:[%s7 + $0x10] sm:$0xff]
  %v810 = vld [vmem:[%s7 + $0x18] sm:$0xff]
  %v811 = vld [vmem:[%s6] sm:$0xff]
  %v812 = vld [vmem:[%s6 + $0x8] sm:$0xff]
  %v813 = vld [vmem:[%s6 + $0x10] sm:$0xff]
  %v814 = vld [vmem:[%s6 + $0x18] sm:$0xff]
  %v815 = vld [vmem:[%s5] sm:$0xff]
  %v816 = vld [vmem:[%s5 + $0x8] sm:$0xff]
  %vm817 = vcmask 130048
  %v819 = vsel %vm817, %v805, 0
  %v822 = vsel %vm817, %v806, 0
  %824 = vmatprep.subr.mxu0 0.0
  %825 = vmatpush1.msra.mxu0 0.0
  %826 = vmatprep.subr.mxu0 0.0
  %827 = vmatpush1.msra.mxu0 0.0
  %828 = vmatprep.subr.mxu0 0.0
  %829 = vmatpush1.msra.mxu0 0.0
  %830 = vmatprep.subr.mxu0 0.0
  %831 = vmatpush1.msra.mxu0 0.0
  %832 = vmatprep.subr.mxu0 0.0
  %833 = vmatpush1.msra.mxu0 0.0
  %834 = vmatprep.subr.mxu0 0.0
  %835 = vmatpush1.msra.mxu0 0.0
  %836 = vmatprep.subr.mxu0 0.0
  %837 = vmatpush1.msra.mxu0 0.0
  %838 = vmatprep.subr.mxu0 0.0
  %839 = vmatpush1.msra.mxu0 0.0
  %840 = vmatprep.subr.mxu0 0.0
  %841 = vmatpush1.msra.mxu0 0.0
  %842 = vmatprep.subr.mxu0 0.0
  %843 = vmatpush1.msra.mxu0 0.0
  %844 = vmatprep.subr.mxu0 0.0
  %845 = vmatpush1.msra.mxu0 0.0
  %846 = vmatprep.subr.mxu0 0.0
  %847 = vmatpush1.msra.mxu0 0.0
  %848 = vmatprep.subr.mxu0 0.0
  %849 = vmatpush1.msra.mxu0 0.0
  %850 = vmatprep.subr.mxu0 0.0
  %851 = vmatpush1.msra.mxu0 0.0
  %852 = vmatprep.subr.mxu0 0.0
  %853 = vmatpush1.msra.mxu0 %v816
  %854 = vmatprep.subr.mxu0 0.0
  %855 = vmatpush1.msra.mxu0 %v815
  %856 = vmatprep.subr.mxu0 0.0
  %857 = vmatpush2.msra.mxu0 0.0
  %858 = vmatprep.subr.mxu0 0.0
  %859 = vmatpush2.msra.mxu0 0.0
  %860 = vmatprep.subr.mxu0 0.0
  %861 = vmatpush2.msra.mxu0 0.0
  %862 = vmatprep.subr.mxu0 0.0
  %863 = vmatpush2.msra.mxu0 0.0
  %864 = vmatprep.subr.mxu0 0.0
  %865 = vmatpush2.msra.mxu0 0.0
  %866 = vmatprep.subr.mxu0 0.0
  %867 = vmatpush2.msra.mxu0 0.0
  %868 = vmatprep.subr.mxu0 0.0
  %869 = vmatpush2.msra.mxu0 0.0
  %870 = vmatprep.subr.mxu0 0.0
  %871 = vmatpush2.msra.mxu0 0.0
  %872 = vmatprep.subr.mxu0 0.0
  %873 = vmatpush2.msra.mxu0 0.0
  %874 = vmatprep.subr.mxu0 0.0
  %875 = vmatpush2.msra.mxu0 0.0
  %876 = vmatprep.subr.mxu0 0.0
  %877 = vmatpush2.msra.mxu0 0.0
  %878 = vmatprep.subr.mxu0 0.0
  %879 = vmatpush2.msra.mxu0 0.0
  %880 = vmatprep.subr.mxu0 0.0
  %881 = vmatpush2.msra.mxu0 0.0
  %882 = vmatprep.subr.mxu0 0.0
  %883 = vmatpush2.msra.mxu0 0.0
  %884 = vmatprep.subr.mxu0 0.0
  %885 = vmatpush2.msra.mxu0 0.0
  %886 = vmatprep.subr.mxu0 0.0
  %887 = vmatpush2.msra.mxu0 0.0
  %888 = vmatprep.mubr.f32.mxu0 0.0
  %889 = vmatmul.mubr.f32.gmra.mxu0 %v819
  %v890 = vpop.f32.mrf.mxu0
  %v891 = vadd.f32 0.0, %v890
  %v892 = vpop.f32.mrf.mxu0
  %893 = vmatprep.mubr.f32.mxu0 0.0
  %894 = vmatmul.mubr.f32.gmra.mxu0 %v822
  %v895 = vpop.f32.mrf.mxu0
  %v896 = vadd.f32 0.0, %v895
  %v897 = vpop.f32.mrf.mxu0
  %898 = vdwg.mxu0
  %s899 = scalar_lea.vmem %s6, 32
  %v900 = vld [vmem:[%s899] sm:$0xff]
  %v901 = vld [vmem:[%s899 + $0x8] sm:$0xff]
  %v902 = vld [vmem:[%s899 + $0x10] sm:$0xff]
  %v903 = vld [vmem:[%s899 + $0x18] sm:$0xff]
  %v905 = vsel %vm817, %v900, 0
  %v908 = vsel %vm817, %v901, 0
  %v911 = vsel %vm817, %v902, 0
  %v914 = vsel %vm817, %v903, 0
  %916 = vmatprep.subr.mxu0 0.0
  %917 = vmatpush1.msra.mxu0 0.0
  %918 = vmatprep.subr.mxu0 0.0
  %919 = vmatpush1.msra.mxu0 0.0
  %920 = vmatprep.subr.mxu0 0.0
  %921 = vmatpush1.msra.mxu0 0.0
  %922 = vmatprep.subr.mxu0 0.0
  %923 = vmatpush1.msra.mxu0 0.0
  %924 = vmatprep.subr.mxu0 0.0
  %925 = vmatpush1.msra.mxu0 0.0
  %926 = vmatprep.subr.mxu0 0.0
  %927 = vmatpush1.msra.mxu0 0.0
  %928 = vmatprep.subr.mxu0 0.0
  %929 = vmatpush1.msra.mxu0 0.0
  %930 = vmatprep.subr.mxu0 0.0
  %931 = vmatpush1.msra.mxu0 0.0
  %932 = vmatprep.subr.mxu0 0.0
  %933 = vmatpush1.msra.mxu0 0.0
  %934 = vmatprep.subr.mxu0 0.0
  %935 = vmatpush1.msra.mxu0 0.0
  %936 = vmatprep.subr.mxu0 0.0
  %937 = vmatpush1.msra.mxu0 0.0
  %938 = vmatprep.subr.mxu0 0.0
  %939 = vmatpush1.msra.mxu0 0.0
  %940 = vmatprep.subr.mxu0 0.0
  %941 = vmatpush1.msra.mxu0 0.0
  %942 = vmatprep.subr.mxu0 0.0
  %943 = vmatpush1.msra.mxu0 0.0
  %944 = vmatprep.subr.mxu0 0.0
  %945 = vmatpush1.msra.mxu0 %v896
  %946 = vmatprep.subr.mxu0 0.0
  %947 = vmatpush1.msra.mxu0 %v891
  %948 = vmatprep.subr.mxu0 0.0
  %949 = vmatpush2.msra.mxu0 0.0
  %950 = vmatprep.subr.mxu0 0.0
  %951 = vmatpush2.msra.mxu0 0.0
  %952 = vmatprep.subr.mxu0 0.0
  %953 = vmatpush2.msra.mxu0 0.0
  %954 = vmatprep.subr.mxu0 0.0
  %955 = vmatpush2.msra.mxu0 0.0
  %956 = vmatprep.subr.mxu0 0.0
  %957 = vmatpush2.msra.mxu0 0.0
  %958 = vmatprep.subr.mxu0 0.0
  %959 = vmatpush2.msra.mxu0 0.0
  %960 = vmatprep.subr.mxu0 0.0
  %961 = vmatpush2.msra.mxu0 0.0
  %962 = vmatprep.subr.mxu0 0.0
  %963 = vmatpush2.msra.mxu0 0.0
  %964 = vmatprep.subr.mxu0 0.0
  %965 = vmatpush2.msra.mxu0 0.0
  %966 = vmatprep.subr.mxu0 0.0
  %967 = vmatpush2.msra.mxu0 0.0
  %968 = vmatprep.subr.mxu0 0.0
  %969 = vmatpush2.msra.mxu0 0.0
  %970 = vmatprep.subr.mxu0 0.0
  %971 = vmatpush2.msra.mxu0 0.0
  %972 = vmatprep.subr.mxu0 0.0
  %973 = vmatpush2.msra.mxu0 0.0
  %974 = vmatprep.subr.mxu0 0.0
  %975 = vmatpush2.msra.mxu0 0.0
  %976 = vmatprep.subr.mxu0 0.0
  %977 = vmatpush2.msra.mxu0 0.0
  %978 = vmatprep.subr.mxu0 0.0
  %979 = vmatpush2.msra.mxu0 0.0
  %980 = vmatprep.mubr.f32.mxu0 0.0
  %981 = vmatmul.mubr.f32.gmra.mxu0 %v905
  %v982 = vpop.f32.mrf.mxu0
  %v983 = vadd.f32 0.0, %v982
  %v984 = vpop.f32.mrf.mxu0
  %985 = vmatprep.mubr.f32.mxu0 0.0
  %986 = vmatmul.mubr.f32.gmra.mxu0 %v908
  %v987 = vpop.f32.mrf.mxu0
  %v988 = vadd.f32 0.0, %v987
  %v989 = vpop.f32.mrf.mxu0
  %990 = vmatprep.mubr.f32.mxu0 0.0
  %991 = vmatmul.mubr.f32.gmra.mxu0 %v911
  %v992 = vpop.f32.mrf.mxu0
  %v993 = vadd.f32 0.0, %v992
  %v994 = vpop.f32.mrf.mxu0
  %995 = vmatprep.mubr.f32.mxu0 0.0
  %996 = vmatmul.mubr.f32.gmra.mxu0 %v914
  %v997 = vpop.f32.mrf.mxu0
  %v998 = vadd.f32 0.0, %v997
  %v999 = vpop.f32.mrf.mxu0
  %1000 = vdwg.mxu0
  %v1002 = vsel %vm817, %v811, 0
  %v1005 = vsel %vm817, %v812, 0
  %v1008 = vsel %vm817, %v813, 0
  %v1011 = vsel %vm817, %v814, 0
  %1013 = vmatprep.subr.mxu0 0.0
  %1014 = vmatpush1.msra.mxu0 0.0
  %1015 = vmatprep.subr.mxu0 0.0
  %1016 = vmatpush1.msra.mxu0 0.0
  %1017 = vmatprep.subr.mxu0 0.0
  %1018 = vmatpush1.msra.mxu0 0.0
  %1019 = vmatprep.subr.mxu0 0.0
  %1020 = vmatpush1.msra.mxu0 0.0
  %1021 = vmatprep.subr.mxu0 0.0
  %1022 = vmatpush1.msra.mxu0 0.0
  %1023 = vmatprep.subr.mxu0 0.0
  %1024 = vmatpush1.msra.mxu0 0.0
  %1025 = vmatprep.subr.mxu0 0.0
  %1026 = vmatpush1.msra.mxu0 0.0
  %1027 = vmatprep.subr.mxu0 0.0
  %1028 = vmatpush1.msra.mxu0 0.0
  %1029 = vmatprep.subr.mxu0 0.0
  %1030 = vmatpush1.msra.mxu0 0.0
  %1031 = vmatprep.subr.mxu0 0.0
  %1032 = vmatpush1.msra.mxu0 0.0
  %1033 = vmatprep.subr.mxu0 0.0
  %1034 = vmatpush1.msra.mxu0 0.0
  %1035 = vmatprep.subr.mxu0 0.0
  %1036 = vmatpush1.msra.mxu0 0.0
  %1037 = vmatprep.subr.mxu0 0.0
  %1038 = vmatpush1.msra.mxu0 0.0
  %1039 = vmatprep.subr.mxu0 0.0
  %1040 = vmatpush1.msra.mxu0 0.0
  %1041 = vmatprep.subr.mxu0 0.0
  %1042 = vmatpush1.msra.mxu0 %v806
  %1043 = vmatprep.subr.mxu0 0.0
  %1044 = vmatpush1.msra.mxu0 %v805
  %1045 = vmatprep.subr.mxu0 0.0
  %1046 = vmatpush2.msra.mxu0 0.0
  %1047 = vmatprep.subr.mxu0 0.0
  %1048 = vmatpush2.msra.mxu0 0.0
  %1049 = vmatprep.subr.mxu0 0.0
  %1050 = vmatpush2.msra.mxu0 0.0
  %1051 = vmatprep.subr.mxu0 0.0
  %1052 = vmatpush2.msra.mxu0 0.0
  %1053 = vmatprep.subr.mxu0 0.0
  %1054 = vmatpush2.msra.mxu0 0.0
  %1055 = vmatprep.subr.mxu0 0.0
  %1056 = vmatpush2.msra.mxu0 0.0
  %1057 = vmatprep.subr.mxu0 0.0
  %1058 = vmatpush2.msra.mxu0 0.0
  %1059 = vmatprep.subr.mxu0 0.0
  %1060 = vmatpush2.msra.mxu0 0.0
  %1061 = vmatprep.subr.mxu0 0.0
  %1062 = vmatpush2.msra.mxu0 0.0
  %1063 = vmatprep.subr.mxu0 0.0
  %1064 = vmatpush2.msra.mxu0 0.0
  %1065 = vmatprep.subr.mxu0 0.0
  %1066 = vmatpush2.msra.mxu0 0.0
  %1067 = vmatprep.subr.mxu0 0.0
  %1068 = vmatpush2.msra.mxu0 0.0
  %1069 = vmatprep.subr.mxu0 0.0
  %1070 = vmatpush2.msra.mxu0 0.0
  %1071 = vmatprep.subr.mxu0 0.0
  %1072 = vmatpush2.msra.mxu0 0.0
  %1073 = vmatprep.subr.mxu0 0.0
  %1074 = vmatpush2.msra.mxu0 0.0
  %1075 = vmatprep.subr.mxu0 0.0
  %1076 = vmatpush2.msra.mxu0 0.0
  %1077 = vmatprep.mubr.f32.mxu0 0.0
  %1078 = vmatmul.mubr.f32.gmra.mxu0 %v1002
  %v1079 = vpop.f32.mrf.mxu0
  %v1080 = vadd.f32 %v983, %v1079
  %v1081 = vpop.f32.mrf.mxu0
  %1082 = vmatprep.mubr.f32.mxu0 0.0
  %1083 = vmatmul.mubr.f32.gmra.mxu0 %v1005
  %v1084 = vpop.f32.mrf.mxu0
  %v1085 = vadd.f32 %v988, %v1084
  %v1086 = vpop.f32.mrf.mxu0
  %1087 = vmatprep.mubr.f32.mxu0 0.0
  %1088 = vmatmul.mubr.f32.gmra.mxu0 %v1008
  %v1089 = vpop.f32.mrf.mxu0
  %v1090 = vadd.f32 %v993, %v1089
  %v1091 = vpop.f32.mrf.mxu0
  %1092 = vmatprep.mubr.f32.mxu0 0.0
  %1093 = vmatmul.mubr.f32.gmra.mxu0 %v1011
  %v1094 = vpop.f32.mrf.mxu0
  %v1095 = vadd.f32 %v998, %v1094
  %v1096 = vpop.f32.mrf.mxu0
  %1097 = vdwg.mxu0
  %v1099 = vsel %vm817, %v891, 0
  %v1102 = vsel %vm817, %v896, 0
  %1104 = vmatprep.subr.mxu0 0.0
  %1105 = vmatpush1.msra.mxu0 0.0
  %1106 = vmatprep.subr.mxu0 0.0
  %1107 = vmatpush1.msra.mxu0 0.0
  %1108 = vmatprep.subr.mxu0 0.0
  %1109 = vmatpush1.msra.mxu0 0.0
  %1110 = vmatprep.subr.mxu0 0.0
  %1111 = vmatpush1.msra.mxu0 0.0
  %1112 = vmatprep.subr.mxu0 0.0
  %1113 = vmatpush1.msra.mxu0 0.0
  %1114 = vmatprep.subr.mxu0 0.0
  %1115 = vmatpush1.msra.mxu0 0.0
  %1116 = vmatprep.subr.mxu0 0.0
  %1117 = vmatpush1.msra.mxu0 0.0
  %1118 = vmatprep.subr.mxu0 0.0
  %1119 = vmatpush1.msra.mxu0 0.0
  %1120 = vmatprep.subr.mxu0 0.0
  %1121 = vmatpush1.msra.mxu0 0.0
  %1122 = vmatprep.subr.mxu0 0.0
  %1123 = vmatpush1.msra.mxu0 0.0
  %1124 = vmatprep.subr.mxu0 0.0
  %1125 = vmatpush1.msra.mxu0 0.0
  %1126 = vmatprep.subr.mxu0 0.0
  %1127 = vmatpush1.msra.mxu0 0.0
  %1128 = vmatprep.subr.mxu0 0.0
  %1129 = vmatpush1.msra.mxu0 0.0
  %1130 = vmatprep.subr.mxu0 0.0
  %1131 = vmatpush1.msra.mxu0 0.0
  %1132 = vmatprep.subr.mxu0 0.0
  %1133 = vmatpush1.msra.mxu0 %v816
  %1134 = vmatprep.subr.mxu0 0.0
  %1135 = vmatpush1.msra.mxu0 %v815
  %1136 = vmatprep.subr.mxu0 0.0
  %1137 = vmatpush2.msra.mxu0 0.0
  %1138 = vmatprep.subr.mxu0 0.0
  %1139 = vmatpush2.msra.mxu0 0.0
  %1140 = vmatprep.subr.mxu0 0.0
  %1141 = vmatpush2.msra.mxu0 0.0
  %1142 = vmatprep.subr.mxu0 0.0
  %1143 = vmatpush2.msra.mxu0 0.0
  %1144 = vmatprep.subr.mxu0 0.0
  %1145 = vmatpush2.msra.mxu0 0.0
  %1146 = vmatprep.subr.mxu0 0.0
  %1147 = vmatpush2.msra.mxu0 0.0
  %1148 = vmatprep.subr.mxu0 0.0
  %1149 = vmatpush2.msra.mxu0 0.0
  %1150 = vmatprep.subr.mxu0 0.0
  %1151 = vmatpush2.msra.mxu0 0.0
  %1152 = vmatprep.subr.mxu0 0.0
  %1153 = vmatpush2.msra.mxu0 0.0
  %1154 = vmatprep.subr.mxu0 0.0
  %1155 = vmatpush2.msra.mxu0 0.0
  %1156 = vmatprep.subr.mxu0 0.0
  %1157 = vmatpush2.msra.mxu0 0.0
  %1158 = vmatprep.subr.mxu0 0.0
  %1159 = vmatpush2.msra.mxu0 0.0
  %1160 = vmatprep.subr.mxu0 0.0
  %1161 = vmatpush2.msra.mxu0 0.0
  %1162 = vmatprep.subr.mxu0 0.0
  %1163 = vmatpush2.msra.mxu0 0.0
  %1164 = vmatprep.subr.mxu0 0.0
  %1165 = vmatpush2.msra.mxu0 0.0
  %1166 = vmatprep.subr.mxu0 0.0
  %1167 = vmatpush2.msra.mxu0 0.0
  %1168 = vmatprep.mubr.f32.mxu0 0.0
  %1169 = vmatmul.mubr.f32.gmra.mxu0 %v1099
  %v1170 = vpop.f32.mrf.mxu0
  %v1171 = vadd.f32 0.0, %v1170
  %v1172 = vpop.f32.mrf.mxu0
  %1173 = vmatprep.mubr.f32.mxu0 0.0
  %1174 = vmatmul.mubr.f32.gmra.mxu0 %v1102
  %v1175 = vpop.f32.mrf.mxu0
  %v1176 = vadd.f32 0.0, %v1175
  %v1177 = vpop.f32.mrf.mxu0
  %1178 = vdwg.mxu0
  %v1179 = vmul.f32 %v1171, 2.0
  %v1180 = vmul.f32 %v1176, 2.0
  %v1181 = vsub.f32 %v1179, %v805
  %v1182 = vsub.f32 %v1180, %v806
  %s1183 = scalar_lea.vmem %s6, 64
  %v1184 = vld [vmem:[%s1183] sm:$0xff]
  %v1185 = vld [vmem:[%s1183 + $0x8] sm:$0xff]
  %v1186 = vld [vmem:[%s1183 + $0x10] sm:$0xff]
  %v1187 = vld [vmem:[%s1183 + $0x18] sm:$0xff]
  %v1189 = vsel %vm817, %v1184, 0
  %v1192 = vsel %vm817, %v1185, 0
  %v1195 = vsel %vm817, %v1186, 0
  %v1198 = vsel %vm817, %v1187, 0
  %1200 = vmatprep.subr.mxu0 0.0
  %1201 = vmatpush1.msra.mxu0 0.0
  %1202 = vmatprep.subr.mxu0 0.0
  %1203 = vmatpush1.msra.mxu0 0.0
  %1204 = vmatprep.subr.mxu0 0.0
  %1205 = vmatpush1.msra.mxu0 0.0
  %1206 = vmatprep.subr.mxu0 0.0
  %1207 = vmatpush1.msra.mxu0 0.0
  %1208 = vmatprep.subr.mxu0 0.0
  %1209 = vmatpush1.msra.mxu0 0.0
  %1210 = vmatprep.subr.mxu0 0.0
  %1211 = vmatpush1.msra.mxu0 0.0
  %1212 = vmatprep.subr.mxu0 0.0
  %1213 = vmatpush1.msra.mxu0 0.0
  %1214 = vmatprep.subr.mxu0 0.0
  %1215 = vmatpush1.msra.mxu0 0.0
  %1216 = vmatprep.subr.mxu0 0.0
  %1217 = vmatpush1.msra.mxu0 0.0
  %1218 = vmatprep.subr.mxu0 0.0
  %1219 = vmatpush1.msra.mxu0 0.0
  %1220 = vmatprep.subr.mxu0 0.0
  %1221 = vmatpush1.msra.mxu0 0.0
  %1222 = vmatprep.subr.mxu0 0.0
  %1223 = vmatpush1.msra.mxu0 0.0
  %1224 = vmatprep.subr.mxu0 0.0
  %1225 = vmatpush1.msra.mxu0 0.0
  %1226 = vmatprep.subr.mxu0 0.0
  %1227 = vmatpush1.msra.mxu0 0.0
  %1228 = vmatprep.subr.mxu0 0.0
  %1229 = vmatpush1.msra.mxu0 %v1182
  %1230 = vmatprep.subr.mxu0 0.0
  %1231 = vmatpush1.msra.mxu0 %v1181
  %1232 = vmatprep.subr.mxu0 0.0
  %1233 = vmatpush2.msra.mxu0 0.0
  %1234 = vmatprep.subr.mxu0 0.0
  %1235 = vmatpush2.msra.mxu0 0.0
  %1236 = vmatprep.subr.mxu0 0.0
  %1237 = vmatpush2.msra.mxu0 0.0
  %1238 = vmatprep.subr.mxu0 0.0
  %1239 = vmatpush2.msra.mxu0 0.0
  %1240 = vmatprep.subr.mxu0 0.0
  %1241 = vmatpush2.msra.mxu0 0.0
  %1242 = vmatprep.subr.mxu0 0.0
  %1243 = vmatpush2.msra.mxu0 0.0
  %1244 = vmatprep.subr.mxu0 0.0
  %1245 = vmatpush2.msra.mxu0 0.0
  %1246 = vmatprep.subr.mxu0 0.0
  %1247 = vmatpush2.msra.mxu0 0.0
  %1248 = vmatprep.subr.mxu0 0.0
  %1249 = vmatpush2.msra.mxu0 0.0
  %1250 = vmatprep.subr.mxu0 0.0
  %1251 = vmatpush2.msra.mxu0 0.0
  %1252 = vmatprep.subr.mxu0 0.0
  %1253 = vmatpush2.msra.mxu0 0.0
  %1254 = vmatprep.subr.mxu0 0.0
  %1255 = vmatpush2.msra.mxu0 0.0
  %1256 = vmatprep.subr.mxu0 0.0
  %1257 = vmatpush2.msra.mxu0 0.0
  %1258 = vmatprep.subr.mxu0 0.0
  %1259 = vmatpush2.msra.mxu0 0.0
  %1260 = vmatprep.subr.mxu0 0.0
  %1261 = vmatpush2.msra.mxu0 0.0
  %1262 = vmatprep.subr.mxu0 0.0
  %1263 = vmatpush2.msra.mxu0 0.0
  %1264 = vmatprep.mubr.f32.mxu0 0.0
  %1265 = vmatmul.mubr.f32.gmra.mxu0 %v1189
  %v1266 = vpop.f32.mrf.mxu0
  %v1267 = vadd.f32 0.0, %v1266
  %v1268 = vpop.f32.mrf.mxu0
  %1269 = vmatprep.mubr.f32.mxu0 0.0
  %1270 = vmatmul.mubr.f32.gmra.mxu0 %v1192
  %v1271 = vpop.f32.mrf.mxu0
  %v1272 = vadd.f32 0.0, %v1271
  %v1273 = vpop.f32.mrf.mxu0
  %1274 = vmatprep.mubr.f32.mxu0 0.0
  %1275 = vmatmul.mubr.f32.gmra.mxu0 %v1195
  %v1276 = vpop.f32.mrf.mxu0
  %v1277 = vadd.f32 0.0, %v1276
  %v1278 = vpop.f32.mrf.mxu0
  %1279 = vmatprep.mubr.f32.mxu0 0.0
  %1280 = vmatmul.mubr.f32.gmra.mxu0 %v1198
  %v1281 = vpop.f32.mrf.mxu0
  %v1282 = vadd.f32 0.0, %v1281
  %v1283 = vpop.f32.mrf.mxu0
  %1284 = vdwg.mxu0
  %v1285 = vadd.f32 %v1080, %v1267
  %v1286 = vadd.f32 %v1085, %v1272
  %v1287 = vadd.f32 %v1090, %v1277
  %v1288 = vadd.f32 %v1095, %v1282
  %1290 = vset.pattern.permute.xlu0 0
  %1291 = vperm.xlu0 %1290, %v807
  %v1292 = vpop.permute.xlu0 %1291
  %1295 = vset.pattern.permute.xlu0 0
  %1296 = vperm.xlu0 %1295, %v808
  %v1297 = vpop.permute.xlu0 %1296
  %1300 = vset.pattern.permute.xlu0 0
  %1301 = vperm.xlu0 %1300, %v809
  %v1302 = vpop.permute.xlu0 %1301
  %1305 = vset.pattern.permute.xlu0 0
  %1306 = vperm.xlu0 %1305, %v810
  %v1307 = vpop.permute.xlu0 %1306
  %v1309 = vadd.f32 %v1285, %v1292
  %v1310 = vadd.f32 %v1286, %v1297
  %v1311 = vadd.f32 %v1287, %v1302
  %v1312 = vadd.f32 %v1288, %v1307
  %v1313 = vmax.f32 %v1309, 0.0
  %v1314 = vmax.f32 %v1310, 0.0
  %v1315 = vmax.f32 %v1311, 0.0
  %v1316 = vmax.f32 %v1312, 0.0
  %v1317 = vld [vmem:[%s8] sm:$0xff]
  %v1318 = vld [vmem:[%s8 + $0x8] sm:$0xff]
  %v1320 = vsel %vm817, %v1313, 0
  %v1323 = vsel %vm817, %v1314, 0
  %v1326 = vsel %vm817, %v1315, 0
  %v1329 = vsel %vm817, %v1316, 0
  %1331 = vmatprep.subr.mxu0 0.0
  %1332 = vmatpush1.msra.mxu0 0.0
  %1333 = vmatprep.subr.mxu0 0.0
  %1334 = vmatpush1.msra.mxu0 0.0
  %1335 = vmatprep.subr.mxu0 0.0
  %1336 = vmatpush1.msra.mxu0 0.0
  %1337 = vmatprep.subr.mxu0 0.0
  %1338 = vmatpush1.msra.mxu0 0.0
  %1339 = vmatprep.subr.mxu0 0.0
  %1340 = vmatpush1.msra.mxu0 0.0
  %1341 = vmatprep.subr.mxu0 0.0
  %1342 = vmatpush1.msra.mxu0 0.0
  %1343 = vmatprep.subr.mxu0 0.0
  %1344 = vmatpush1.msra.mxu0 0.0
  %1345 = vmatprep.subr.mxu0 0.0
  %1346 = vmatpush1.msra.mxu0 0.0
  %1347 = vmatprep.subr.mxu0 0.0
  %1348 = vmatpush1.msra.mxu0 0.0
  %1349 = vmatprep.subr.mxu0 0.0
  %1350 = vmatpush1.msra.mxu0 0.0
  %1351 = vmatprep.subr.mxu0 0.0
  %1352 = vmatpush1.msra.mxu0 0.0
  %1353 = vmatprep.subr.mxu0 0.0
  %1354 = vmatpush1.msra.mxu0 0.0
  %1355 = vmatprep.subr.mxu0 0.0
  %1356 = vmatpush1.msra.mxu0 0.0
  %1357 = vmatprep.subr.mxu0 0.0
  %1358 = vmatpush1.msra.mxu0 0.0
  %1359 = vmatprep.subr.mxu0 0.0
  %1360 = vmatpush1.msra.mxu0 %v1318
  %1361 = vmatprep.subr.mxu0 0.0
  %1362 = vmatpush1.msra.mxu0 %v1317
  %1363 = vmatprep.subr.mxu0 0.0
  %1364 = vmatpush2.msra.mxu0 0.0
  %1365 = vmatprep.subr.mxu0 0.0
  %1366 = vmatpush2.msra.mxu0 0.0
  %1367 = vmatprep.subr.mxu0 0.0
  %1368 = vmatpush2.msra.mxu0 0.0
  %1369 = vmatprep.subr.mxu0 0.0
  %1370 = vmatpush2.msra.mxu0 0.0
  %1371 = vmatprep.subr.mxu0 0.0
  %1372 = vmatpush2.msra.mxu0 0.0
  %1373 = vmatprep.subr.mxu0 0.0
  %1374 = vmatpush2.msra.mxu0 0.0
  %1375 = vmatprep.subr.mxu0 0.0
  %1376 = vmatpush2.msra.mxu0 0.0
  %1377 = vmatprep.subr.mxu0 0.0
  %1378 = vmatpush2.msra.mxu0 0.0
  %1379 = vmatprep.subr.mxu0 0.0
  %1380 = vmatpush2.msra.mxu0 0.0
  %1381 = vmatprep.subr.mxu0 0.0
  %1382 = vmatpush2.msra.mxu0 0.0
  %1383 = vmatprep.subr.mxu0 0.0
  %1384 = vmatpush2.msra.mxu0 0.0
  %1385 = vmatprep.subr.mxu0 0.0
  %1386 = vmatpush2.msra.mxu0 0.0
  %1387 = vmatprep.subr.mxu0 0.0
  %1388 = vmatpush2.msra.mxu0 0.0
  %1389 = vmatprep.subr.mxu0 0.0
  %1390 = vmatpush2.msra.mxu0 0.0
  %1391 = vmatprep.subr.mxu0 0.0
  %1392 = vmatpush2.msra.mxu0 0.0
  %1393 = vmatprep.subr.mxu0 0.0
  %1394 = vmatpush2.msra.mxu0 0.0
  %1395 = vmatprep.mubr.f32.mxu0 0.0
  %1396 = vmatmul.mubr.f32.gmra.mxu0 %v1320
  %v1397 = vpop.f32.mrf.mxu0
  %v1398 = vadd.f32 0.0, %v1397
  %v1399 = vpop.f32.mrf.mxu0
  %1400 = vmatprep.mubr.f32.mxu0 0.0
  %1401 = vmatmul.mubr.f32.gmra.mxu0 %v1323
  %v1402 = vpop.f32.mrf.mxu0
  %v1403 = vadd.f32 0.0, %v1402
  %v1404 = vpop.f32.mrf.mxu0
  %1405 = vmatprep.mubr.f32.mxu0 0.0
  %1406 = vmatmul.mubr.f32.gmra.mxu0 %v1326
  %v1407 = vpop.f32.mrf.mxu0
  %v1408 = vadd.f32 0.0, %v1407
  %v1409 = vpop.f32.mrf.mxu0
  %1410 = vmatprep.mubr.f32.mxu0 0.0
  %1411 = vmatmul.mubr.f32.gmra.mxu0 %v1329
  %v1412 = vpop.f32.mrf.mxu0
  %v1413 = vadd.f32 0.0, %v1412
  %v1414 = vpop.f32.mrf.mxu0
  %1415 = vdwg.mxu0
  %s1416 = scalar_lea.vmem %s8, 16
  %v1417 = vld [vmem:[%s1416] sm:$0xff]
  %v1418 = vld [vmem:[%s1416 + $0x8] sm:$0xff]
  %1419 = vmatprep.subr.mxu0 0.0
  %1420 = vmatpush1.msra.mxu0 0.0
  %1421 = vmatprep.subr.mxu0 0.0
  %1422 = vmatpush1.msra.mxu0 0.0
  %1423 = vmatprep.subr.mxu0 0.0
  %1424 = vmatpush1.msra.mxu0 0.0
  %1425 = vmatprep.subr.mxu0 0.0
  %1426 = vmatpush1.msra.mxu0 0.0
  %1427 = vmatprep.subr.mxu0 0.0
  %1428 = vmatpush1.msra.mxu0 0.0
  %1429 = vmatprep.subr.mxu0 0.0
  %1430 = vmatpush1.msra.mxu0 0.0
  %1431 = vmatprep.subr.mxu0 0.0
  %1432 = vmatpush1.msra.mxu0 0.0
  %1433 = vmatprep.subr.mxu0 0.0
  %1434 = vmatpush1.msra.mxu0 0.0
  %1435 = vmatprep.subr.mxu0 0.0
  %1436 = vmatpush1.msra.mxu0 0.0
  %1437 = vmatprep.subr.mxu0 0.0
  %1438 = vmatpush1.msra.mxu0 0.0
  %1439 = vmatprep.subr.mxu0 0.0
  %1440 = vmatpush1.msra.mxu0 0.0
  %1441 = vmatprep.subr.mxu0 0.0
  %1442 = vmatpush1.msra.mxu0 0.0
  %1443 = vmatprep.subr.mxu0 0.0
  %1444 = vmatpush1.msra.mxu0 0.0
  %1445 = vmatprep.subr.mxu0 0.0
  %1446 = vmatpush1.msra.mxu0 0.0
  %1447 = vmatprep.subr.mxu0 0.0
  %1448 = vmatpush1.msra.mxu0 %v1418
  %1449 = vmatprep.subr.mxu0 0.0
  %1450 = vmatpush1.msra.mxu0 %v1417
  %1451 = vmatprep.subr.mxu0 0.0
  %1452 = vmatpush2.msra.mxu0 0.0
  %1453 = vmatprep.subr.mxu0 0.0
  %1454 = vmatpush2.msra.mxu0 0.0
  %1455 = vmatprep.subr.mxu0 0.0
  %1456 = vmatpush2.msra.mxu0 0.0
  %1457 = vmatprep.subr.mxu0 0.0
  %1458 = vmatpush2.msra.mxu0 0.0
  %1459 = vmatprep.subr.mxu0 0.0
  %1460 = vmatpush2.msra.mxu0 0.0
  %1461 = vmatprep.subr.mxu0 0.0
  %1462 = vmatpush2.msra.mxu0 0.0
  %1463 = vmatprep.subr.mxu0 0.0
  %1464 = vmatpush2.msra.mxu0 0.0
  %1465 = vmatprep.subr.mxu0 0.0
  %1466 = vmatpush2.msra.mxu0 0.0
  %1467 = vmatprep.subr.mxu0 0.0
  %1468 = vmatpush2.msra.mxu0 0.0
  %1469 = vmatprep.subr.mxu0 0.0
  %1470 = vmatpush2.msra.mxu0 0.0
  %1471 = vmatprep.subr.mxu0 0.0
  %1472 = vmatpush2.msra.mxu0 0.0
  %1473 = vmatprep.subr.mxu0 0.0
  %1474 = vmatpush2.msra.mxu0 0.0
  %1475 = vmatprep.subr.mxu0 0.0
  %1476 = vmatpush2.msra.mxu0 0.0
  %1477 = vmatprep.subr.mxu0 0.0
  %1478 = vmatpush2.msra.mxu0 0.0
  %1479 = vmatprep.subr.mxu0 0.0
  %1480 = vmatpush2.msra.mxu0 0.0
  %1481 = vmatprep.subr.mxu0 0.0
  %1482 = vmatpush2.msra.mxu0 0.0
  %1483 = vmatprep.mubr.f32.mxu0 0.0
  %1484 = vmatmul.mubr.f32.gmra.mxu0 %v1320
  %v1485 = vpop.f32.mrf.mxu0
  %v1486 = vadd.f32 0.0, %v1485
  %v1487 = vpop.f32.mrf.mxu0
  %1488 = vmatprep.mubr.f32.mxu0 0.0
  %1489 = vmatmul.mubr.f32.gmra.mxu0 %v1323
  %v1490 = vpop.f32.mrf.mxu0
  %v1491 = vadd.f32 0.0, %v1490
  %v1492 = vpop.f32.mrf.mxu0
  %1493 = vmatprep.mubr.f32.mxu0 0.0
  %1494 = vmatmul.mubr.f32.gmra.mxu0 %v1326
  %v1495 = vpop.f32.mrf.mxu0
  %v1496 = vadd.f32 0.0, %v1495
  %v1497 = vpop.f32.mrf.mxu0
  %1498 = vmatprep.mubr.f32.mxu0 0.0
  %1499 = vmatmul.mubr.f32.gmra.mxu0 %v1329
  %v1500 = vpop.f32.mrf.mxu0
  %v1501 = vadd.f32 0.0, %v1500
  %v1502 = vpop.f32.mrf.mxu0
  %1503 = vdwg.mxu0
  %v1504 = vmax.f32 %v1398, %v1486
  %v1505 = vmax.f32 %v1403, %v1491
  %v1506 = vmax.f32 %v1408, %v1496
  %v1507 = vmax.f32 %v1413, %v1501
  %s1508 = scalar_lea.vmem %s8, 32
  %v1509 = vld [vmem:[%s1508] sm:$0xff]
  %v1510 = vld [vmem:[%s1508 + $0x8] sm:$0xff]
  %1511 = vmatprep.subr.mxu0 0.0
  %1512 = vmatpush1.msra.mxu0 0.0
  %1513 = vmatprep.subr.mxu0 0.0
  %1514 = vmatpush1.msra.mxu0 0.0
  %1515 = vmatprep.subr.mxu0 0.0
  %1516 = vmatpush1.msra.mxu0 0.0
  %1517 = vmatprep.subr.mxu0 0.0
  %1518 = vmatpush1.msra.mxu0 0.0
  %1519 = vmatprep.subr.mxu0 0.0
  %1520 = vmatpush1.msra.mxu0 0.0
  %1521 = vmatprep.subr.mxu0 0.0
  %1522 = vmatpush1.msra.mxu0 0.0
  %1523 = vmatprep.subr.mxu0 0.0
  %1524 = vmatpush1.msra.mxu0 0.0
  %1525 = vmatprep.subr.mxu0 0.0
  %1526 = vmatpush1.msra.mxu0 0.0
  %1527 = vmatprep.subr.mxu0 0.0
  %1528 = vmatpush1.msra.mxu0 0.0
  %1529 = vmatprep.subr.mxu0 0.0
  %1530 = vmatpush1.msra.mxu0 0.0
  %1531 = vmatprep.subr.mxu0 0.0
  %1532 = vmatpush1.msra.mxu0 0.0
  %1533 = vmatprep.subr.mxu0 0.0
  %1534 = vmatpush1.msra.mxu0 0.0
  %1535 = vmatprep.subr.mxu0 0.0
  %1536 = vmatpush1.msra.mxu0 0.0
  %1537 = vmatprep.subr.mxu0 0.0
  %1538 = vmatpush1.msra.mxu0 0.0
  %1539 = vmatprep.subr.mxu0 0.0
  %1540 = vmatpush1.msra.mxu0 %v1510
  %1541 = vmatprep.subr.mxu0 0.0
  %1542 = vmatpush1.msra.mxu0 %v1509
  %1543 = vmatprep.subr.mxu0 0.0
  %1544 = vmatpush2.msra.mxu0 0.0
  %1545 = vmatprep.subr.mxu0 0.0
  %1546 = vmatpush2.msra.mxu0 0.0
  %1547 = vmatprep.subr.mxu0 0.0
  %1548 = vmatpush2.msra.mxu0 0.0
  %1549 = vmatprep.subr.mxu0 0.0
  %1550 = vmatpush2.msra.mxu0 0.0
  %1551 = vmatprep.subr.mxu0 0.0
  %1552 = vmatpush2.msra.mxu0 0.0
  %1553 = vmatprep.subr.mxu0 0.0
  %1554 = vmatpush2.msra.mxu0 0.0
  %1555 = vmatprep.subr.mxu0 0.0
  %1556 = vmatpush2.msra.mxu0 0.0
  %1557 = vmatprep.subr.mxu0 0.0
  %1558 = vmatpush2.msra.mxu0 0.0
  %1559 = vmatprep.subr.mxu0 0.0
  %1560 = vmatpush2.msra.mxu0 0.0
  %1561 = vmatprep.subr.mxu0 0.0
  %1562 = vmatpush2.msra.mxu0 0.0
  %1563 = vmatprep.subr.mxu0 0.0
  %1564 = vmatpush2.msra.mxu0 0.0
  %1565 = vmatprep.subr.mxu0 0.0
  %1566 = vmatpush2.msra.mxu0 0.0
  %1567 = vmatprep.subr.mxu0 0.0
  %1568 = vmatpush2.msra.mxu0 0.0
  %1569 = vmatprep.subr.mxu0 0.0
  %1570 = vmatpush2.msra.mxu0 0.0
  %1571 = vmatprep.subr.mxu0 0.0
  %1572 = vmatpush2.msra.mxu0 0.0
  %1573 = vmatprep.subr.mxu0 0.0
  %1574 = vmatpush2.msra.mxu0 0.0
  %1575 = vmatprep.mubr.f32.mxu0 0.0
  %1576 = vmatmul.mubr.f32.gmra.mxu0 %v1320
  %v1577 = vpop.f32.mrf.mxu0
  %v1578 = vadd.f32 0.0, %v1577
  %v1579 = vpop.f32.mrf.mxu0
  %1580 = vmatprep.mubr.f32.mxu0 0.0
  %1581 = vmatmul.mubr.f32.gmra.mxu0 %v1323
  %v1582 = vpop.f32.mrf.mxu0
  %v1583 = vadd.f32 0.0, %v1582
  %v1584 = vpop.f32.mrf.mxu0
  %1585 = vmatprep.mubr.f32.mxu0 0.0
  %1586 = vmatmul.mubr.f32.gmra.mxu0 %v1326
  %v1587 = vpop.f32.mrf.mxu0
  %v1588 = vadd.f32 0.0, %v1587
  %v1589 = vpop.f32.mrf.mxu0
  %1590 = vmatprep.mubr.f32.mxu0 0.0
  %1591 = vmatmul.mubr.f32.gmra.mxu0 %v1329
  %v1592 = vpop.f32.mrf.mxu0
  %v1593 = vadd.f32 0.0, %v1592
  %v1594 = vpop.f32.mrf.mxu0
  %1595 = vdwg.mxu0
  %v1596 = vmax.f32 %v1504, %v1578
  %v1597 = vmax.f32 %v1505, %v1583
  %v1598 = vmax.f32 %v1506, %v1588
  %v1599 = vmax.f32 %v1507, %v1593
  %s1600 = scalar_lea.vmem %s8, 48
  %v1601 = vld [vmem:[%s1600] sm:$0xff]
  %v1602 = vld [vmem:[%s1600 + $0x8] sm:$0xff]
  %1603 = vmatprep.subr.mxu0 0.0
  %1604 = vmatpush1.msra.mxu0 0.0
  %1605 = vmatprep.subr.mxu0 0.0
  %1606 = vmatpush1.msra.mxu0 0.0
  %1607 = vmatprep.subr.mxu0 0.0
  %1608 = vmatpush1.msra.mxu0 0.0
  %1609 = vmatprep.subr.mxu0 0.0
  %1610 = vmatpush1.msra.mxu0 0.0
  %1611 = vmatprep.subr.mxu0 0.0
  %1612 = vmatpush1.msra.mxu0 0.0
  %1613 = vmatprep.subr.mxu0 0.0
  %1614 = vmatpush1.msra.mxu0 0.0
  %1615 = vmatprep.subr.mxu0 0.0
  %1616 = vmatpush1.msra.mxu0 0.0
  %1617 = vmatprep.subr.mxu0 0.0
  %1618 = vmatpush1.msra.mxu0 0.0
  %1619 = vmatprep.subr.mxu0 0.0
  %1620 = vmatpush1.msra.mxu0 0.0
  %1621 = vmatprep.subr.mxu0 0.0
  %1622 = vmatpush1.msra.mxu0 0.0
  %1623 = vmatprep.subr.mxu0 0.0
  %1624 = vmatpush1.msra.mxu0 0.0
  %1625 = vmatprep.subr.mxu0 0.0
  %1626 = vmatpush1.msra.mxu0 0.0
  %1627 = vmatprep.subr.mxu0 0.0
  %1628 = vmatpush1.msra.mxu0 0.0
  %1629 = vmatprep.subr.mxu0 0.0
  %1630 = vmatpush1.msra.mxu0 0.0
  %1631 = vmatprep.subr.mxu0 0.0
  %1632 = vmatpush1.msra.mxu0 %v1602
  %1633 = vmatprep.subr.mxu0 0.0
  %1634 = vmatpush1.msra.mxu0 %v1601
  %1635 = vmatprep.subr.mxu0 0.0
  %1636 = vmatpush2.msra.mxu0 0.0
  %1637 = vmatprep.subr.mxu0 0.0
  %1638 = vmatpush2.msra.mxu0 0.0
  %1639 = vmatprep.subr.mxu0 0.0
  %1640 = vmatpush2.msra.mxu0 0.0
  %1641 = vmatprep.subr.mxu0 0.0
  %1642 = vmatpush2.msra.mxu0 0.0
  %1643 = vmatprep.subr.mxu0 0.0
  %1644 = vmatpush2.msra.mxu0 0.0
  %1645 = vmatprep.subr.mxu0 0.0
  %1646 = vmatpush2.msra.mxu0 0.0
  %1647 = vmatprep.subr.mxu0 0.0
  %1648 = vmatpush2.msra.mxu0 0.0
  %1649 = vmatprep.subr.mxu0 0.0
  %1650 = vmatpush2.msra.mxu0 0.0
  %1651 = vmatprep.subr.mxu0 0.0
  %1652 = vmatpush2.msra.mxu0 0.0
  %1653 = vmatprep.subr.mxu0 0.0
  %1654 = vmatpush2.msra.mxu0 0.0
  %1655 = vmatprep.subr.mxu0 0.0
  %1656 = vmatpush2.msra.mxu0 0.0
  %1657 = vmatprep.subr.mxu0 0.0
  %1658 = vmatpush2.msra.mxu0 0.0
  %1659 = vmatprep.subr.mxu0 0.0
  %1660 = vmatpush2.msra.mxu0 0.0
  %1661 = vmatprep.subr.mxu0 0.0
  %1662 = vmatpush2.msra.mxu0 0.0
  %1663 = vmatprep.subr.mxu0 0.0
  %1664 = vmatpush2.msra.mxu0 0.0
  %1665 = vmatprep.subr.mxu0 0.0
  %1666 = vmatpush2.msra.mxu0 0.0
  %1667 = vmatprep.mubr.f32.mxu0 0.0
  %1668 = vmatmul.mubr.f32.gmra.mxu0 %v1320
  %v1669 = vpop.f32.mrf.mxu0
  %v1670 = vadd.f32 0.0, %v1669
  %v1671 = vpop.f32.mrf.mxu0
  %1672 = vmatprep.mubr.f32.mxu0 0.0
  %1673 = vmatmul.mubr.f32.gmra.mxu0 %v1323
  %v1674 = vpop.f32.mrf.mxu0
  %v1675 = vadd.f32 0.0, %v1674
  %v1676 = vpop.f32.mrf.mxu0
  %1677 = vmatprep.mubr.f32.mxu0 0.0
  %1678 = vmatmul.mubr.f32.gmra.mxu0 %v1326
  %v1679 = vpop.f32.mrf.mxu0
  %v1680 = vadd.f32 0.0, %v1679
  %v1681 = vpop.f32.mrf.mxu0
  %1682 = vmatprep.mubr.f32.mxu0 0.0
  %1683 = vmatmul.mubr.f32.gmra.mxu0 %v1329
  %v1684 = vpop.f32.mrf.mxu0
  %v1685 = vadd.f32 0.0, %v1684
  %v1686 = vpop.f32.mrf.mxu0
  %1687 = vdwg.mxu0
  %v1688 = vmax.f32 %v1596, %v1670
  %v1689 = vmax.f32 %v1597, %v1675
  %v1690 = vmax.f32 %v1598, %v1680
  %v1691 = vmax.f32 %v1599, %v1685
  %vm1692 = vcmask 31744
  %1693 = vst.msk [vmem:[%s9] sm:$0xff] %vm1692, %v1688
  %1694 = vst.msk [vmem:[%s9 + $0x8] sm:$0xff] %vm1692, %v1689
  %1695 = vst.msk [vmem:[%s9 + $0x10] sm:$0xff] %vm1692, %v1690
  %1696 = vst.msk [vmem:[%s9 + $0x18] sm:$0xff] %vm1692, %v1691
  // Predicated region
  $region38: #{net_forward.2} parent=0 // pred_check
    _
  $region39: #{net_forward.2} parent=0 // pred_check_branch
    %1698 = sbr.rel (0) target = $region41
  $region40: #{net_forward.2} parent=0 // pred_region
    _
  $region41: #{net_forward.2} parent=0 // pred_fallthru
    _
  // Predicated region
  $region42: #{net_forward.2} parent=0 // pred_check
    _
  $region43: #{net_forward.2} parent=0 // pred_check_branch
    %1700 = sbr.rel (0) target = $region45
  $region44: #{net_forward.2} parent=0 // pred_region
    _
  $region45: #{net_forward.2} parent=0 // pred_fallthru
    _

</llo_original>
